<compile_context>
chip_gen: v7x
topology: tpu7x:2x2x1
jax: 0.10.0
libtpu: 0.0.40
codegen_flags: <defaults>
</compile_context>

<pallas_src>
import jax
import jax.numpy as jnp
from jax.experimental import pallas as pl
from jax.experimental.pallas import tpu as pltpu

H = 768          # BERT hidden size (fixed by the module: dense = Linear(768*2, 30))
NUM_OUT = 30     # dense output features
NUM_LAYERS_USED = 4

TILE_B = 1024            # max batch tile (per-step inputs ~12 MiB bf16, 2x buffered)
_MIN_TILE = 128          # keep per-step DMA >> the ~0.35us fixed step overhead
_SUBLANE = 16            # bf16 sublane quantum (multiple of the f32 quantum 8)
_VMEM_LIMIT_BYTES = 30 << 20   # fits v7x (64 MiB physical) and raises v5e's 16 MiB default


def _head_kernel(q_ref, a_ref, w_ref, b_ref, o_ref):
    # q_ref, a_ref: (L, tb, 768) bf16 -- CLS token of the last L hidden layers
    # w_ref:        (1536, 30)  bf16 -- dense weight (in, out)
    # b_ref:        (1, 30)     f32  -- dense bias
    # o_ref:        (tb, 30)    f32
    L = q_ref.shape[0]
    # x = concat([mean_q, mean_a], -1) @ W + b, computed as 2*L MXU matmuls on the
    # bf16 tiles (no lane concat, no f32 (tb,768) intermediates).  mean∘matmul is
    # linear, so the 1/L is a single scale on the small (tb,30) accumulator.
    wq = w_ref[0:H, :]                                        # (768, 30) bf16
    wa = w_ref[H:2 * H, :]                                    # (768, 30) bf16
    acc = jnp.dot(q_ref[0], wq, preferred_element_type=jnp.float32)
    acc = acc + jnp.dot(a_ref[0], wa, preferred_element_type=jnp.float32)
    for l in range(1, L):
        acc = acc + jnp.dot(q_ref[l], wq, preferred_element_type=jnp.float32)
        acc = acc + jnp.dot(a_ref[l], wa, preferred_element_type=jnp.float32)
    o_ref[...] = (acc * (1.0 / L) + b_ref[...]).astype(o_ref.dtype)


def _pick_tile(batch):
    """Batch tile: full-extent for tiny batches, else a sublane-multiple tile that
    yields >=4 grid steps (2 per v7x TensorCore) without exceeding TILE_B."""
    if batch <= _MIN_TILE:
        return batch                                   # single full-extent block
    target = _SUBLANE * pl.cdiv(pl.cdiv(batch, 4), _SUBLANE)
    return min(TILE_B, max(_MIN_TILE, target))


@jax.jit
def nlp_head_pallas(q_cls, a_cls, w, b):
    """q_cls, a_cls: (4, B, 768); w: (1536, 30); b: (1, 30) -> (B, 30) f32."""
    batch = q_cls.shape[1]
    tb = _pick_tile(batch)
    grid = (pl.cdiv(batch, tb),)      # ragged last tile is masked by Pallas; no jnp.pad

    q_cls = q_cls.astype(jnp.bfloat16)
    a_cls = a_cls.astype(jnp.bfloat16)
    w_bf = w.astype(jnp.bfloat16)     # bf16 weights: single native MXU pass
    b = b.astype(jnp.float32)

    in_bytes = 2 * NUM_LAYERS_USED * batch * H * 2        # bf16 CLS features
    cost = pl.CostEstimate(
        flops=2 * 2 * NUM_LAYERS_USED * batch * H * NUM_OUT,
        transcendentals=0,
        bytes_accessed=in_bytes + batch * NUM_OUT * 4 + (2 * H) * NUM_OUT * 2 + NUM_OUT * 4,
    )

    return pl.pallas_call(
        _head_kernel,
        out_shape=jax.ShapeDtypeStruct((batch, NUM_OUT), jnp.float32),
        grid=grid,
        in_specs=[
            pl.BlockSpec((NUM_LAYERS_USED, tb, H), lambda i: (0, i, 0)),
            pl.BlockSpec((NUM_LAYERS_USED, tb, H), lambda i: (0, i, 0)),
            pl.BlockSpec((2 * H, NUM_OUT), lambda i: (0, 0)),   # weight: resident
            pl.BlockSpec((1, NUM_OUT), lambda i: (0, 0)),       # bias:   resident
        ],
        out_specs=pl.BlockSpec((tb, NUM_OUT), lambda i: (i, 0)),
        compiler_params=pltpu.CompilerParams(
            dimension_semantics=("parallel",),        # batch tiles shard across TCs
            vmem_limit_bytes=_VMEM_LIMIT_BYTES,
        ),
        cost_estimate=cost,
    )(q_cls, a_cls, w_bf, b)


# ----------------------------------------------------------------------------
# Glue: deterministic parameter init + a tiny deterministic stand-in for BERT
# hidden states (the transformer backbone itself is out of scope).
# ----------------------------------------------------------------------------
def init_params(key):
    kw, kb, ke = jax.random.split(key, 3)
    bound = 1.0 / jnp.sqrt(2.0 * H)            # nn.Linear default init bound
    w = jax.random.uniform(kw, (2 * H, NUM_OUT), jnp.float32, -bound, bound)
    b = jax.random.uniform(kb, (1, NUM_OUT), jnp.float32, -bound, bound)
    emb = jax.random.normal(ke, (100, H), jnp.float32) * 0.02   # toy vocab of 100
    return w, b, emb


def fake_bert_cls_layers(ids, mask, token_type_ids, emb):
    """Deterministic stand-in returning the CLS token of the last 4 'hidden layers'
    as (4, B, 768) bfloat16 (halves the HBM->VMEM DMA volume of the head)."""
    # TODO(synk): real BertModel(ids, attention_mask, token_type_ids) not translated.
    x = emb[ids] + 0.01 * token_type_ids[..., None].astype(jnp.float32)   # (B, S, H)
    x = x * mask[..., None].astype(jnp.float32)
    cls = x[:, 0, :]                                                      # (B, H)
    layers = [jnp.tanh(cls * (1.0 + 0.1 * l)) for l in range(NUM_LAYERS_USED)]
    return jnp.stack(layers, axis=0).astype(jnp.bfloat16)                 # (4, B, H)


def nlp_forward(ids_q, mask_q, tt_q, ids_a, mask_a, tt_a, w, b, emb):
    q_cls = fake_bert_cls_layers(ids_q, mask_q, tt_q, emb)
    a_cls = fake_bert_cls_layers(ids_a, mask_a, tt_a, emb)
    # Dropout(p=0.2) in eval mode == identity.
    return nlp_head_pallas(q_cls, a_cls, w, b)


def _reference_head(q_cls, a_cls, w, b):
    """Pure-JAX reference of mean -> concat -> linear, using the same bf16 CLS
    features and bf16-rounded weights the kernel consumes."""
    qf = q_cls.astype(jnp.float32)
    af = a_cls.astype(jnp.float32)
    wf = w.astype(jnp.bfloat16).astype(jnp.float32)
    x = jnp.concatenate([jnp.mean(qf, axis=0), jnp.mean(af, axis=0)], axis=-1)
    return x @ wf + b


def _run_and_check(batch, seq, w, b, emb, key):
    k_idq, k_ida = jax.random.split(key)
    ids_q = jax.random.randint(k_idq, (batch, seq), 0, 100, dtype=jnp.int32)
    ids_a = jax.random.randint(k_ida, (batch, seq), 0, 100, dtype=jnp.int32)
    ones = jnp.ones((batch, seq), dtype=jnp.int32)
    zeros = jnp.zeros((batch, seq), dtype=jnp.int32)

    out = nlp_forward(ids_q, ones, zeros, ids_a, ones, zeros, w, b, emb)
    out = jax.block_until_ready(out)
    assert out.shape == (batch, NUM_OUT), out.shape

    q_cls = fake_bert_cls_layers(ids_q, ones, zeros, emb)
    a_cls = fake_bert_cls_layers(ids_a, ones, zeros, emb)
    ref = _reference_head(q_cls, a_cls, w, b)
    err = float(jnp.max(jnp.abs(out - ref)))
    assert jnp.allclose(out, ref, atol=2e-3, rtol=2e-3), err
    return out


if __name__ == "__main__":
    key = jax.random.PRNGKey(0)
    k_params, k_small, k_ragged = jax.random.split(key, 3)

    w, b, emb = init_params(k_params)

    # Small smoke test (B=2, S=8): single full-extent batch tile.
    _run_and_check(2, 8, w, b, emb, k_small)
    # Ragged batch (B=130): exercises the multi-tile grid with a masked last tile
    # (no whole-array padding copy).
    _run_and_check(130, 8, w, b, emb, k_ragged)

    print("KERNEL_OK")
</pallas_src>

<mosaic_0001>
module attributes {stable_mosaic.version = 11 : i64} {
  func.func @_head_kernel(%arg0: i32, %arg1: memref<4x2x768xbf16, #tpu.memory_space<vmem>>, %arg2: memref<4x2x768xbf16, #tpu.memory_space<vmem>>, %arg3: memref<1536x30xbf16, #tpu.memory_space<vmem>>, %arg4: memref<1x30xf32, #tpu.memory_space<vmem>>, %arg5: memref<2x30xf32, #tpu.memory_space<vmem>>) attributes {dimension_semantics = [#tpu.dimension_semantics<parallel>], iteration_bounds = array<i64: 1>, scalar_prefetch = 0 : i64, scratch_operands = 0 : i64, tpu.core_type = #tpu.core_type<tc>, window_params = [{transform_indices = @transform_0, window_bounds = array<i64: 4, 2, 768>}, {transform_indices = @transform_1, window_bounds = array<i64: 4, 2, 768>}, {pipeline_mode = #tpu.pipeline_mode<synchronous>, transform_indices = @transform_2, window_bounds = array<i64: 1536, 30>}, {pipeline_mode = #tpu.pipeline_mode<synchronous>, transform_indices = @transform_3, window_bounds = array<i64: 1, 30>}, {transform_indices = @transform_4, window_bounds = array<i64: 2, 30>}]} {
    %c0 = arith.constant 0 : index
    %c0_0 = arith.constant 0 : index
    %0 = vector.load %arg3[%c0, %c0_0] : memref<1536x30xbf16, #tpu.memory_space<vmem>>, vector<768x30xbf16>
    %c768 = arith.constant 768 : index
    %c0_1 = arith.constant 0 : index
    %1 = vector.load %arg3[%c768, %c0_1] : memref<1536x30xbf16, #tpu.memory_space<vmem>>, vector<768x30xbf16>
    %c0_2 = arith.constant 0 : index
    %c0_3 = arith.constant 0 : index
    %c0_4 = arith.constant 0 : index
    %2 = vector.load %arg1[%c0_2, %c0_3, %c0_4] : memref<4x2x768xbf16, #tpu.memory_space<vmem>>, vector<1x2x768xbf16>
    %3 = vector.shape_cast %2 : vector<1x2x768xbf16> to vector<2x768xbf16>
    %cst = arith.constant dense<0.000000e+00> : vector<2x30xf32>
    %4 = tpu.matmul %3, %0, %cst {dimension_numbers = #tpu.dot_dimension_numbers<[1], [0], [0], [1], [0, 0, 1, 1], [], []>} : vector<2x768xbf16>, vector<768x30xbf16>, vector<2x30xf32> -> vector<2x30xf32>
    %c0_5 = arith.constant 0 : index
    %c0_6 = arith.constant 0 : index
    %c0_7 = arith.constant 0 : index
    %5 = vector.load %arg2[%c0_5, %c0_6, %c0_7] : memref<4x2x768xbf16, #tpu.memory_space<vmem>>, vector<1x2x768xbf16>
    %6 = vector.shape_cast %5 : vector<1x2x768xbf16> to vector<2x768xbf16>
    %cst_8 = arith.constant dense<0.000000e+00> : vector<2x30xf32>
    %7 = tpu.matmul %6, %1, %cst_8 {dimension_numbers = #tpu.dot_dimension_numbers<[1], [0], [0], [1], [0, 0, 1, 1], [], []>} : vector<2x768xbf16>, vector<768x30xbf16>, vector<2x30xf32> -> vector<2x30xf32>
    %8 = arith.addf %4, %7 : vector<2x30xf32>
    %c1 = arith.constant 1 : index
    %c0_9 = arith.constant 0 : index
    %c0_10 = arith.constant 0 : index
    %9 = vector.load %arg1[%c1, %c0_9, %c0_10] : memref<4x2x768xbf16, #tpu.memory_space<vmem>>, vector<1x2x768xbf16>
    %10 = vector.shape_cast %9 : vector<1x2x768xbf16> to vector<2x768xbf16>
    %cst_11 = arith.constant dense<0.000000e+00> : vector<2x30xf32>
    %11 = tpu.matmul %10, %0, %cst_11 {dimension_numbers = #tpu.dot_dimension_numbers<[1], [0], [0], [1], [0, 0, 1, 1], [], []>} : vector<2x768xbf16>, vector<768x30xbf16>, vector<2x30xf32> -> vector<2x30xf32>
    %12 = arith.addf %8, %11 : vector<2x30xf32>
    %c1_12 = arith.constant 1 : index
    %c0_13 = arith.constant 0 : index
    %c0_14 = arith.constant 0 : index
    %13 = vector.load %arg2[%c1_12, %c0_13, %c0_14] : memref<4x2x768xbf16, #tpu.memory_space<vmem>>, vector<1x2x768xbf16>
    %14 = vector.shape_cast %13 : vector<1x2x768xbf16> to vector<2x768xbf16>
    %cst_15 = arith.constant dense<0.000000e+00> : vector<2x30xf32>
    %15 = tpu.matmul %14, %1, %cst_15 {dimension_numbers = #tpu.dot_dimension_numbers<[1], [0], [0], [1], [0, 0, 1, 1], [], []>} : vector<2x768xbf16>, vector<768x30xbf16>, vector<2x30xf32> -> vector<2x30xf32>
    %16 = arith.addf %12, %15 : vector<2x30xf32>
    %c2 = arith.constant 2 : index
    %c0_16 = arith.constant 0 : index
    %c0_17 = arith.constant 0 : index
    %17 = vector.load %arg1[%c2, %c0_16, %c0_17] : memref<4x2x768xbf16, #tpu.memory_space<vmem>>, vector<1x2x768xbf16>
    %18 = vector.shape_cast %17 : vector<1x2x768xbf16> to vector<2x768xbf16>
    %cst_18 = arith.constant dense<0.000000e+00> : vector<2x30xf32>
    %19 = tpu.matmul %18, %0, %cst_18 {dimension_numbers = #tpu.dot_dimension_numbers<[1], [0], [0], [1], [0, 0, 1, 1], [], []>} : vector<2x768xbf16>, vector<768x30xbf16>, vector<2x30xf32> -> vector<2x30xf32>
    %20 = arith.addf %16, %19 : vector<2x30xf32>
    %c2_19 = arith.constant 2 : index
    %c0_20 = arith.constant 0 : index
    %c0_21 = arith.constant 0 : index
    %21 = vector.load %arg2[%c2_19, %c0_20, %c0_21] : memref<4x2x768xbf16, #tpu.memory_space<vmem>>, vector<1x2x768xbf16>
    %22 = vector.shape_cast %21 : vector<1x2x768xbf16> to vector<2x768xbf16>
    %cst_22 = arith.constant dense<0.000000e+00> : vector<2x30xf32>
    %23 = tpu.matmul %22, %1, %cst_22 {dimension_numbers = #tpu.dot_dimension_numbers<[1], [0], [0], [1], [0, 0, 1, 1], [], []>} : vector<2x768xbf16>, vector<768x30xbf16>, vector<2x30xf32> -> vector<2x30xf32>
    %24 = arith.addf %20, %23 : vector<2x30xf32>
    %c3 = arith.constant 3 : index
    %c0_23 = arith.constant 0 : index
    %c0_24 = arith.constant 0 : index
    %25 = vector.load %arg1[%c3, %c0_23, %c0_24] : memref<4x2x768xbf16, #tpu.memory_space<vmem>>, vector<1x2x768xbf16>
    %26 = vector.shape_cast %25 : vector<1x2x768xbf16> to vector<2x768xbf16>
    %cst_25 = arith.constant dense<0.000000e+00> : vector<2x30xf32>
    %27 = tpu.matmul %26, %0, %cst_25 {dimension_numbers = #tpu.dot_dimension_numbers<[1], [0], [0], [1], [0, 0, 1, 1], [], []>} : vector<2x768xbf16>, vector<768x30xbf16>, vector<2x30xf32> -> vector<2x30xf32>
    %28 = arith.addf %24, %27 : vector<2x30xf32>
    %c3_26 = arith.constant 3 : index
    %c0_27 = arith.constant 0 : index
    %c0_28 = arith.constant 0 : index
    %29 = vector.load %arg2[%c3_26, %c0_27, %c0_28] : memref<4x2x768xbf16, #tpu.memory_space<vmem>>, vector<1x2x768xbf16>
    %30 = vector.shape_cast %29 : vector<1x2x768xbf16> to vector<2x768xbf16>
    %cst_29 = arith.constant dense<0.000000e+00> : vector<2x30xf32>
    %31 = tpu.matmul %30, %1, %cst_29 {dimension_numbers = #tpu.dot_dimension_numbers<[1], [0], [0], [1], [0, 0, 1, 1], [], []>} : vector<2x768xbf16>, vector<768x30xbf16>, vector<2x30xf32> -> vector<2x30xf32>
    %32 = arith.addf %28, %31 : vector<2x30xf32>
    %cst_30 = arith.constant 2.500000e-01 : f32
    %33 = vector.broadcast %cst_30 : f32 to vector<2x30xf32>
    %34 = arith.mulf %32, %33 : vector<2x30xf32>
    %c0_31 = arith.constant 0 : index
    %c0_32 = arith.constant 0 : index
    %35 = vector.load %arg4[%c0_31, %c0_32] : memref<1x30xf32, #tpu.memory_space<vmem>>, vector<1x30xf32>
    %36 = vector.broadcast %35 : vector<1x30xf32> to vector<2x30xf32>
    %37 = arith.addf %34, %36 : vector<2x30xf32>
    %c0_33 = arith.constant 0 : index
    %c0_34 = arith.constant 0 : index
    %38 = vector.load %arg5[%c0_33, %c0_34] : memref<2x30xf32, #tpu.memory_space<vmem>>, vector<2x30xf32>
    tpu.vector_store %arg5[%c0_33, %c0_34], %37 {strides = array<i32>} : memref<2x30xf32, #tpu.memory_space<vmem>>, vector<2x30xf32>,
    return
  }
  func.func @transform_0(%arg0: i32) -> (i32, i32, i32) {
    %c0_i32 = arith.constant 0 : i32
    %c0_i32_0 = arith.constant 0 : i32
    %c0_i32_1 = arith.constant 0 : i32
    return %c0_i32, %arg0, %c0_i32_0 : i32, i32, i32
  }
  func.func @transform_1(%arg0: i32) -> (i32, i32, i32) {
    %c0_i32 = arith.constant 0 : i32
    %c0_i32_0 = arith.constant 0 : i32
    %c0_i32_1 = arith.constant 0 : i32
    return %c0_i32, %arg0, %c0_i32_0 : i32, i32, i32
  }
  func.func @transform_2(%arg0: i32) -> (i32, i32) {
    %c0_i32 = arith.constant 0 : i32
    %c0_i32_0 = arith.constant 0 : i32
    %c0_i32_1 = arith.constant 0 : i32
    return %c0_i32, %c0_i32_0 : i32, i32
  }
  func.func @transform_3(%arg0: i32) -> (i32, i32) {
    %c0_i32 = arith.constant 0 : i32
    %c0_i32_0 = arith.constant 0 : i32
    %c0_i32_1 = arith.constant 0 : i32
    return %c0_i32, %c0_i32_0 : i32, i32
  }
  func.func @transform_4(%arg0: i32) -> (i32, i32) {
    %c0_i32 = arith.constant 0 : i32
    %c0_i32_0 = arith.constant 0 : i32
    return %arg0, %c0_i32 : i32, i32
  }
}

</mosaic_0001>

<llo_original>
// kernel: nlp_head_pallas.1
$region0: #{nlp_head_pallas.1}
  #allocation0 [shape = 'u32[]', space=smem, size = 0x4, offset = 0x4, fixed_abs, tag = 'smem constant byte address 0x4 - core index']
  #allocation1 [shape = 'u32[144,128]{1,0:T(1,128)}', space=vmem, size = 0x12000, scoped, tag = 'internal scratch']
  %s0 = inlined_call_operand.vmem [shape: bf16[4,2,768], index: 0, kind: input, shape index: {}]
  %s1 = inlined_call_operand.vmem [shape: bf16[4,2,768], index: 1, kind: input, shape index: {}]
  %s2 = inlined_call_operand.vmem [shape: bf16[1536,30], index: 2, kind: input, shape index: {}]
  %s3 = inlined_call_operand.vmem [shape: f32[1,30], index: 3, kind: input, shape index: {}]
  %s4 = inlined_call_operand.hbm [shape: f32[2,30], index: 4, kind: output, shape index: {}]
  %s5 = sld [smem:[#allocation0]]
  $region26: #{nlp_head_pallas.1} parent=0
    _
  %s7 = ssub.s32 1, %s5
  %s8 = scalar_select 0, %s7, %s5
  $region1: #{nlp_head_pallas.1} parent=0
    #allocation2 [shape = 'u8[1024]{0}', space=vmem, size = 0x400, scoped, tag = 'output window, operand 0, single buffered']
    #allocation3 [shape = 's32[1]{0}', space=sflag, size = 0x4, scoped, tag = 'scoped memory for nlp_head_pallas.1']
    %9 = vsyncpa [#allocation3], 0
    // Predicated region
    $region2: #{nlp_head_pallas.1} parent=1 // pred_check
      _
    $region3: #{nlp_head_pallas.1} parent=1 // pred_check_branch
      %11 = sbr.rel (0) target = $region5
    $region4: #{nlp_head_pallas.1} parent=1 // pred_region
      _
    $region5: #{nlp_head_pallas.1} parent=1 // pred_fallthru
      _
    // Predicated region
    $region6: #{nlp_head_pallas.1} parent=1 // pred_check
      _
    $region7: #{nlp_head_pallas.1} parent=1 // pred_check_branch
      %13 = sbr.rel (0) target = $region9
    $region8: #{nlp_head_pallas.1} parent=1 // pred_region
      _
    $region9: #{nlp_head_pallas.1} parent=1 // pred_fallthru
      _
    // Predicated region
    $region10: #{nlp_head_pallas.1} parent=1 // pred_check
      _
    $region11: #{nlp_head_pallas.1} parent=1 // pred_check_branch
      %15 = sbr.rel (0) target = $region13
    $region12: #{nlp_head_pallas.1} parent=1 // pred_region
      _
    $region13: #{nlp_head_pallas.1} parent=1 // pred_fallthru
      _
    // Predicated region
    $region14: #{nlp_head_pallas.1} parent=1 // pred_check
      _
    $region15: #{nlp_head_pallas.1} parent=1 // pred_check_branch
      %17 = sbr.rel (0) target = $region17
    $region16: #{nlp_head_pallas.1} parent=1 // pred_region
      _
    $region17: #{nlp_head_pallas.1} parent=1 // pred_fallthru
      _
    %v19 = vld [vmem:[%s2] sm:$0xf]
    %v20 = vld [vmem:[%s2 + $0x4] sm:$0xf]
    %v21 = vld [vmem:[%s2 + $0x8] sm:$0xf]
    %v22 = vld [vmem:[%s2 + $0xc] sm:$0xf]
    %v23 = vld [vmem:[%s2 + $0x10] sm:$0xf]
    %v24 = vld [vmem:[%s2 + $0x14] sm:$0xf]
    %v25 = vld [vmem:[%s2 + $0x18] sm:$0xf]
    %v26 = vld [vmem:[%s2 + $0x1c] sm:$0xf]
    %v27 = vld [vmem:[%s2 + $0x20] sm:$0xf]
    %v28 = vld [vmem:[%s2 + $0x24] sm:$0xf]
    %v29 = vld [vmem:[%s2 + $0x28] sm:$0xf]
    %v30 = vld [vmem:[%s2 + $0x2c] sm:$0xf]
    %v31 = vld [vmem:[%s2 + $0x30] sm:$0xf]
    %v32 = vld [vmem:[%s2 + $0x34] sm:$0xf]
    %v33 = vld [vmem:[%s2 + $0x38] sm:$0xf]
    %v34 = vld [vmem:[%s2 + $0x3c] sm:$0xf]
    %v35 = vld [vmem:[%s2 + $0x40] sm:$0xf]
    %v36 = vld [vmem:[%s2 + $0x44] sm:$0xf]
    %v37 = vld [vmem:[%s2 + $0x48] sm:$0xf]
    %v38 = vld [vmem:[%s2 + $0x4c] sm:$0xf]
    %v39 = vld [vmem:[%s2 + $0x50] sm:$0xf]
    %v40 = vld [vmem:[%s2 + $0x54] sm:$0xf]
    %v41 = vld [vmem:[%s2 + $0x58] sm:$0xf]
    %v42 = vld [vmem:[%s2 + $0x5c] sm:$0xf]
    %v43 = vld [vmem:[%s2 + $0x60] sm:$0xf]
    %v44 = vld [vmem:[%s2 + $0x64] sm:$0xf]
    %v45 = vld [vmem:[%s2 + $0x68] sm:$0xf]
    %v46 = vld [vmem:[%s2 + $0x6c] sm:$0xf]
    %v47 = vld [vmem:[%s2 + $0x70] sm:$0xf]
    %v48 = vld [vmem:[%s2 + $0x74] sm:$0xf]
    %v49 = vld [vmem:[%s2 + $0x78] sm:$0xf]
    %v50 = vld [vmem:[%s2 + $0x7c] sm:$0xf]
    %v51 = vld [vmem:[%s2 + $0x80] sm:$0xf]
    %v52 = vld [vmem:[%s2 + $0x84] sm:$0xf]
    %v53 = vld [vmem:[%s2 + $0x88] sm:$0xf]
    %v54 = vld [vmem:[%s2 + $0x8c] sm:$0xf]
    %v55 = vld [vmem:[%s2 + $0x90] sm:$0xf]
    %v56 = vld [vmem:[%s2 + $0x94] sm:$0xf]
    %v57 = vld [vmem:[%s2 + $0x98] sm:$0xf]
    %v58 = vld [vmem:[%s2 + $0x9c] sm:$0xf]
    %v59 = vld [vmem:[%s2 + $0xa0] sm:$0xf]
    %v60 = vld [vmem:[%s2 + $0xa4] sm:$0xf]
    %v61 = vld [vmem:[%s2 + $0xa8] sm:$0xf]
    %v62 = vld [vmem:[%s2 + $0xac] sm:$0xf]
    %v63 = vld [vmem:[%s2 + $0xb0] sm:$0xf]
    %v64 = vld [vmem:[%s2 + $0xb4] sm:$0xf]
    %v65 = vld [vmem:[%s2 + $0xb8] sm:$0xf]
    %v66 = vld [vmem:[%s2 + $0xbc] sm:$0xf]
    %v67 = vld [vmem:[%s2 + $0xc0] sm:$0xf]
    %v68 = vld [vmem:[%s2 + $0xc4] sm:$0xf]
    %v69 = vld [vmem:[%s2 + $0xc8] sm:$0xf]
    %v70 = vld [vmem:[%s2 + $0xcc] sm:$0xf]
    %v71 = vld [vmem:[%s2 + $0xd0] sm:$0xf]
    %v72 = vld [vmem:[%s2 + $0xd4] sm:$0xf]
    %v73 = vld [vmem:[%s2 + $0xd8] sm:$0xf]
    %v74 = vld [vmem:[%s2 + $0xdc] sm:$0xf]
    %v75 = vld [vmem:[%s2 + $0xe0] sm:$0xf]
    %v76 = vld [vmem:[%s2 + $0xe4] sm:$0xf]
    %v77 = vld [vmem:[%s2 + $0xe8] sm:$0xf]
    %v78 = vld [vmem:[%s2 + $0xec] sm:$0xf]
    %v79 = vld [vmem:[%s2 + $0xf0] sm:$0xf]
    %v80 = vld [vmem:[%s2 + $0xf4] sm:$0xf]
    %v81 = vld [vmem:[%s2 + $0xf8] sm:$0xf]
    %v82 = vld [vmem:[%s2 + $0xfc] sm:$0xf]
    %v83 = vld [vmem:[%s2 + $0x100] sm:$0xf]
    %v84 = vld [vmem:[%s2 + $0x104] sm:$0xf]
    %v85 = vld [vmem:[%s2 + $0x108] sm:$0xf]
    %v86 = vld [vmem:[%s2 + $0x10c] sm:$0xf]
    %v87 = vld [vmem:[%s2 + $0x110] sm:$0xf]
    %v88 = vld [vmem:[%s2 + $0x114] sm:$0xf]
    %v89 = vld [vmem:[%s2 + $0x118] sm:$0xf]
    %v90 = vld [vmem:[%s2 + $0x11c] sm:$0xf]
    %v91 = vld [vmem:[%s2 + $0x120] sm:$0xf]
    %v92 = vld [vmem:[%s2 + $0x124] sm:$0xf]
    %v93 = vld [vmem:[%s2 + $0x128] sm:$0xf]
    %v94 = vld [vmem:[%s2 + $0x12c] sm:$0xf]
    %v95 = vld [vmem:[%s2 + $0x130] sm:$0xf]
    %v96 = vld [vmem:[%s2 + $0x134] sm:$0xf]
    %v97 = vld [vmem:[%s2 + $0x138] sm:$0xf]
    %v98 = vld [vmem:[%s2 + $0x13c] sm:$0xf]
    %v99 = vld [vmem:[%s2 + $0x140] sm:$0xf]
    %v100 = vld [vmem:[%s2 + $0x144] sm:$0xf]
    %v101 = vld [vmem:[%s2 + $0x148] sm:$0xf]
    %v102 = vld [vmem:[%s2 + $0x14c] sm:$0xf]
    %v103 = vld [vmem:[%s2 + $0x150] sm:$0xf]
    %v104 = vld [vmem:[%s2 + $0x154] sm:$0xf]
    %v105 = vld [vmem:[%s2 + $0x158] sm:$0xf]
    %v106 = vld [vmem:[%s2 + $0x15c] sm:$0xf]
    %v107 = vld [vmem:[%s2 + $0x160] sm:$0xf]
    %v108 = vld [vmem:[%s2 + $0x164] sm:$0xf]
    %v109 = vld [vmem:[%s2 + $0x168] sm:$0xf]
    %v110 = vld [vmem:[%s2 + $0x16c] sm:$0xf]
    %v111 = vld [vmem:[%s2 + $0x170] sm:$0xf]
    %v112 = vld [vmem:[%s2 + $0x174] sm:$0xf]
    %v113 = vld [vmem:[%s2 + $0x178] sm:$0xf]
    %v114 = vld [vmem:[%s2 + $0x17c] sm:$0xf]
    %v115 = vld [vmem:[%s2 + $0x180] sm:$0xf]
    %v116 = vld [vmem:[%s2 + $0x184] sm:$0xf]
    %v117 = vld [vmem:[%s2 + $0x188] sm:$0xf]
    %v118 = vld [vmem:[%s2 + $0x18c] sm:$0xf]
    %v119 = vld [vmem:[%s2 + $0x190] sm:$0xf]
    %v120 = vld [vmem:[%s2 + $0x194] sm:$0xf]
    %v121 = vld [vmem:[%s2 + $0x198] sm:$0xf]
    %v122 = vld [vmem:[%s2 + $0x19c] sm:$0xf]
    %v123 = vld [vmem:[%s2 + $0x1a0] sm:$0xf]
    %v124 = vld [vmem:[%s2 + $0x1a4] sm:$0xf]
    %v125 = vld [vmem:[%s2 + $0x1a8] sm:$0xf]
    %v126 = vld [vmem:[%s2 + $0x1ac] sm:$0xf]
    %v127 = vld [vmem:[%s2 + $0x1b0] sm:$0xf]
    %v128 = vld [vmem:[%s2 + $0x1b4] sm:$0xf]
    %v129 = vld [vmem:[%s2 + $0x1b8] sm:$0xf]
    %v130 = vld [vmem:[%s2 + $0x1bc] sm:$0xf]
    %v131 = vld [vmem:[%s2 + $0x1c0] sm:$0xf]
    %v132 = vld [vmem:[%s2 + $0x1c4] sm:$0xf]
    %v133 = vld [vmem:[%s2 + $0x1c8] sm:$0xf]
    %v134 = vld [vmem:[%s2 + $0x1cc] sm:$0xf]
    %v135 = vld [vmem:[%s2 + $0x1d0] sm:$0xf]
    %v136 = vld [vmem:[%s2 + $0x1d4] sm:$0xf]
    %v137 = vld [vmem:[%s2 + $0x1d8] sm:$0xf]
    %v138 = vld [vmem:[%s2 + $0x1dc] sm:$0xf]
    %v139 = vld [vmem:[%s2 + $0x1e0] sm:$0xf]
    %v140 = vld [vmem:[%s2 + $0x1e4] sm:$0xf]
    %v141 = vld [vmem:[%s2 + $0x1e8] sm:$0xf]
    %v142 = vld [vmem:[%s2 + $0x1ec] sm:$0xf]
    %v143 = vld [vmem:[%s2 + $0x1f0] sm:$0xf]
    %v144 = vld [vmem:[%s2 + $0x1f4] sm:$0xf]
    %v145 = vld [vmem:[%s2 + $0x1f8] sm:$0xf]
    %v146 = vld [vmem:[%s2 + $0x1fc] sm:$0xf]
    %v147 = vld [vmem:[%s2 + $0x200] sm:$0xf]
    %v148 = vld [vmem:[%s2 + $0x204] sm:$0xf]
    %v149 = vld [vmem:[%s2 + $0x208] sm:$0xf]
    %v150 = vld [vmem:[%s2 + $0x20c] sm:$0xf]
    %v151 = vld [vmem:[%s2 + $0x210] sm:$0xf]
    %v152 = vld [vmem:[%s2 + $0x214] sm:$0xf]
    %v153 = vld [vmem:[%s2 + $0x218] sm:$0xf]
    %v154 = vld [vmem:[%s2 + $0x21c] sm:$0xf]
    %v155 = vld [vmem:[%s2 + $0x220] sm:$0xf]
    %v156 = vld [vmem:[%s2 + $0x224] sm:$0xf]
    %v157 = vld [vmem:[%s2 + $0x228] sm:$0xf]
    %v158 = vld [vmem:[%s2 + $0x22c] sm:$0xf]
    %v159 = vld [vmem:[%s2 + $0x230] sm:$0xf]
    %v160 = vld [vmem:[%s2 + $0x234] sm:$0xf]
    %v161 = vld [vmem:[%s2 + $0x238] sm:$0xf]
    %v162 = vld [vmem:[%s2 + $0x23c] sm:$0xf]
    %v163 = vld [vmem:[%s2 + $0x240] sm:$0xf]
    %v164 = vld [vmem:[%s2 + $0x244] sm:$0xf]
    %v165 = vld [vmem:[%s2 + $0x248] sm:$0xf]
    %v166 = vld [vmem:[%s2 + $0x24c] sm:$0xf]
    %v167 = vld [vmem:[%s2 + $0x250] sm:$0xf]
    %v168 = vld [vmem:[%s2 + $0x254] sm:$0xf]
    %v169 = vld [vmem:[%s2 + $0x258] sm:$0xf]
    %v170 = vld [vmem:[%s2 + $0x25c] sm:$0xf]
    %v171 = vld [vmem:[%s2 + $0x260] sm:$0xf]
    %v172 = vld [vmem:[%s2 + $0x264] sm:$0xf]
    %v173 = vld [vmem:[%s2 + $0x268] sm:$0xf]
    %v174 = vld [vmem:[%s2 + $0x26c] sm:$0xf]
    %v175 = vld [vmem:[%s2 + $0x270] sm:$0xf]
    %v176 = vld [vmem:[%s2 + $0x274] sm:$0xf]
    %v177 = vld [vmem:[%s2 + $0x278] sm:$0xf]
    %v178 = vld [vmem:[%s2 + $0x27c] sm:$0xf]
    %v179 = vld [vmem:[%s2 + $0x280] sm:$0xf]
    %v180 = vld [vmem:[%s2 + $0x284] sm:$0xf]
    %v181 = vld [vmem:[%s2 + $0x288] sm:$0xf]
    %v182 = vld [vmem:[%s2 + $0x28c] sm:$0xf]
    %v183 = vld [vmem:[%s2 + $0x290] sm:$0xf]
    %v184 = vld [vmem:[%s2 + $0x294] sm:$0xf]
    %v185 = vld [vmem:[%s2 + $0x298] sm:$0xf]
    %v186 = vld [vmem:[%s2 + $0x29c] sm:$0xf]
    %v187 = vld [vmem:[%s2 + $0x2a0] sm:$0xf]
    %v188 = vld [vmem:[%s2 + $0x2a4] sm:$0xf]
    %v189 = vld [vmem:[%s2 + $0x2a8] sm:$0xf]
    %v190 = vld [vmem:[%s2 + $0x2ac] sm:$0xf]
    %v191 = vld [vmem:[%s2 + $0x2b0] sm:$0xf]
    %v192 = vld [vmem:[%s2 + $0x2b4] sm:$0xf]
    %v193 = vld [vmem:[%s2 + $0x2b8] sm:$0xf]
    %v194 = vld [vmem:[%s2 + $0x2bc] sm:$0xf]
    %v195 = vld [vmem:[%s2 + $0x2c0] sm:$0xf]
    %v196 = vld [vmem:[%s2 + $0x2c4] sm:$0xf]
    %v197 = vld [vmem:[%s2 + $0x2c8] sm:$0xf]
    %v198 = vld [vmem:[%s2 + $0x2cc] sm:$0xf]
    %v199 = vld [vmem:[%s2 + $0x2d0] sm:$0xf]
    %v200 = vld [vmem:[%s2 + $0x2d4] sm:$0xf]
    %v201 = vld [vmem:[%s2 + $0x2d8] sm:$0xf]
    %v202 = vld [vmem:[%s2 + $0x2dc] sm:$0xf]
    %v203 = vld [vmem:[%s2 + $0x2e0] sm:$0xf]
    %v204 = vld [vmem:[%s2 + $0x2e4] sm:$0xf]
    %v205 = vld [vmem:[%s2 + $0x2e8] sm:$0xf]
    %v206 = vld [vmem:[%s2 + $0x2ec] sm:$0xf]
    %v207 = vld [vmem:[%s2 + $0x2f0] sm:$0xf]
    %v208 = vld [vmem:[%s2 + $0x2f4] sm:$0xf]
    %v209 = vld [vmem:[%s2 + $0x2f8] sm:$0xf]
    %v210 = vld [vmem:[%s2 + $0x2fc] sm:$0xf]
    %v211 = vld [vmem:[%s0] sm:$0x3f]
    %v212 = vld [vmem:[%s1] sm:$0x3f]
    %v214 = vcombine.high %v212, %v212
    %v216 = vunpack.c.l.s4 1966171168
    %v217 = vunpack.c.0.s8 %v216
    %v218 = vlaneseq
    %v219 = vshrl.u32 %v218, 7
    %v220 = vsub.s32 %v217, %v219
    %v221 = vrot.slane %v212, %v220
    %v223 = vunpack.c.l.s4 1966171168
    %v224 = vunpack.c.0.s8 %v223
    %v225 = vlaneseq
    %v226 = vshrl.u32 %v225, 7
    %v227 = vsub.s32 %v224, %v226
    %v228 = vrot.slane %v214, %v227
    %v229 = vcombine.high %v221, %v221
    %v230 = vcombine.high %v228, %v228
    %v232 = vunpack.c.l.s4 1966171168
    %v233 = vunpack.c.0.s8 %v232
    %v234 = vlaneseq
    %v235 = vshrl.u32 %v234, 7
    %v236 = vsub.s32 %v233, %v235
    %v237 = vrot.slane %v221, %v236
    %v239 = vunpack.c.l.s4 1966171168
    %v240 = vunpack.c.0.s8 %v239
    %v241 = vlaneseq
    %v242 = vshrl.u32 %v241, 7
    %v243 = vsub.s32 %v240, %v242
    %v244 = vrot.slane %v228, %v243
    %v246 = vunpack.c.l.s4 1966171168
    %v247 = vunpack.c.0.s8 %v246
    %v248 = vlaneseq
    %v249 = vshrl.u32 %v248, 7
    %v250 = vsub.s32 %v247, %v249
    %v251 = vrot.slane %v229, %v250
    %v253 = vunpack.c.l.s4 1966171168
    %v254 = vunpack.c.0.s8 %v253
    %v255 = vlaneseq
    %v256 = vshrl.u32 %v255, 7
    %v257 = vsub.s32 %v254, %v256
    %v258 = vrot.slane %v230, %v257
    %v259 = vcombine.high %v237, %v237
    %v260 = vcombine.high %v251, %v251
    %v363 = vunpack.c.l.b16 %v115
    %v364 = vunpack.c.l.b16 %v116
    %v365 = vunpack.c.l.b16 %v117
    %v366 = vunpack.c.l.b16 %v118
    %v367 = vunpack.c.l.b16 %v119
    %v368 = vunpack.c.l.b16 %v120
    %v369 = vunpack.c.l.b16 %v121
    %v370 = vunpack.c.l.b16 %v122
    %v371 = vunpack.c.l.b16 %v123
    %v372 = vunpack.c.l.b16 %v124
    %v373 = vunpack.c.l.b16 %v125
    %v374 = vunpack.c.l.b16 %v126
    %v375 = vunpack.c.l.b16 %v127
    %v376 = vunpack.c.l.b16 %v128
    %v377 = vunpack.c.l.b16 %v129
    %v378 = vunpack.c.l.b16 %v130
    %v379 = vunpack.c.l.b16 %v131
    %v380 = vunpack.c.l.b16 %v132
    %v381 = vunpack.c.l.b16 %v133
    %v382 = vunpack.c.l.b16 %v134
    %v383 = vunpack.c.l.b16 %v135
    %v384 = vunpack.c.l.b16 %v136
    %v385 = vunpack.c.l.b16 %v137
    %v386 = vunpack.c.l.b16 %v138
    %v387 = vunpack.c.l.b16 %v139
    %v388 = vunpack.c.l.b16 %v140
    %v389 = vunpack.c.l.b16 %v141
    %v390 = vunpack.c.l.b16 %v142
    %v391 = vunpack.c.l.b16 %v143
    %v392 = vunpack.c.l.b16 %v144
    %v393 = vunpack.c.l.b16 %v145
    %v394 = vunpack.c.l.b16 %v146
    %v395 = vunpack.c.l.b16 %v147
    %v396 = vunpack.c.l.b16 %v148
    %v397 = vunpack.c.l.b16 %v149
    %v398 = vunpack.c.l.b16 %v150
    %v399 = vunpack.c.l.b16 %v151
    %v400 = vunpack.c.l.b16 %v152
    %v401 = vunpack.c.l.b16 %v153
    %v402 = vunpack.c.l.b16 %v154
    %v403 = vunpack.c.l.b16 %v155
    %v404 = vunpack.c.l.b16 %v156
    %v405 = vunpack.c.l.b16 %v157
    %v406 = vunpack.c.l.b16 %v158
    %v407 = vunpack.c.l.b16 %v159
    %v408 = vunpack.c.l.b16 %v160
    %v409 = vunpack.c.l.b16 %v161
    %v410 = vunpack.c.l.b16 %v162
    %v411 = vunpack.c.l.b16 %v163
    %v412 = vunpack.c.l.b16 %v164
    %v413 = vunpack.c.l.b16 %v165
    %v414 = vunpack.c.l.b16 %v166
    %v415 = vunpack.c.l.b16 %v167
    %v416 = vunpack.c.l.b16 %v168
    %v417 = vunpack.c.l.b16 %v169
    %v418 = vunpack.c.l.b16 %v170
    %v419 = vunpack.c.l.b16 %v171
    %v420 = vunpack.c.l.b16 %v172
    %v421 = vunpack.c.l.b16 %v173
    %v422 = vunpack.c.l.b16 %v174
    %v423 = vunpack.c.l.b16 %v175
    %v424 = vunpack.c.l.b16 %v176
    %v425 = vunpack.c.l.b16 %v177
    %v426 = vunpack.c.l.b16 %v178
    %v427 = vunpack.c.l.b16 %v179
    %v428 = vunpack.c.l.b16 %v180
    %v429 = vunpack.c.l.b16 %v181
    %v430 = vunpack.c.l.b16 %v182
    %v431 = vunpack.c.l.b16 %v183
    %v432 = vunpack.c.l.b16 %v184
    %v433 = vunpack.c.l.b16 %v185
    %v434 = vunpack.c.l.b16 %v186
    %v435 = vunpack.c.l.b16 %v187
    %v436 = vunpack.c.l.b16 %v188
    %v437 = vunpack.c.l.b16 %v189
    %v438 = vunpack.c.l.b16 %v190
    %v439 = vunpack.c.l.b16 %v191
    %v440 = vunpack.c.l.b16 %v192
    %v441 = vunpack.c.l.b16 %v193
    %v442 = vunpack.c.l.b16 %v194
    %v443 = vunpack.c.l.b16 %v195
    %v444 = vunpack.c.l.b16 %v196
    %v445 = vunpack.c.l.b16 %v197
    %v446 = vunpack.c.l.b16 %v198
    %v447 = vunpack.c.l.b16 %v199
    %v448 = vunpack.c.l.b16 %v200
    %v449 = vunpack.c.l.b16 %v201
    %v450 = vunpack.c.l.b16 %v202
    %v451 = vunpack.c.l.b16 %v203
    %v452 = vunpack.c.l.b16 %v204
    %v453 = vunpack.c.l.b16 %v205
    %v454 = vunpack.c.l.b16 %v206
    %v455 = vunpack.c.l.b16 %v207
    %v456 = vunpack.c.l.b16 %v208
    %v457 = vunpack.c.l.b16 %v209
    %v458 = vunpack.c.l.b16 %v210
    %v459 = vpack.c.b16 %v364, %v363
    %v460 = vpack.c.b16 %v366, %v365
    %v461 = vpack.c.b16 %v368, %v367
    %v462 = vpack.c.b16 %v370, %v369
    %v463 = vpack.c.b16 %v372, %v371
    %v464 = vpack.c.b16 %v374, %v373
    %v465 = vpack.c.b16 %v376, %v375
    %v466 = vpack.c.b16 %v378, %v377
    %v467 = vpack.c.b16 %v380, %v379
    %v468 = vpack.c.b16 %v382, %v381
    %v469 = vpack.c.b16 %v384, %v383
    %v470 = vpack.c.b16 %v386, %v385
    %v471 = vpack.c.b16 %v388, %v387
    %v472 = vpack.c.b16 %v390, %v389
    %v473 = vpack.c.b16 %v392, %v391
    %v474 = vpack.c.b16 %v394, %v393
    %v475 = vpack.c.b16 %v396, %v395
    %v476 = vpack.c.b16 %v398, %v397
    %v477 = vpack.c.b16 %v400, %v399
    %v478 = vpack.c.b16 %v402, %v401
    %v479 = vpack.c.b16 %v404, %v403
    %v480 = vpack.c.b16 %v406, %v405
    %v481 = vpack.c.b16 %v408, %v407
    %v482 = vpack.c.b16 %v410, %v409
    %v483 = vpack.c.b16 %v412, %v411
    %v484 = vpack.c.b16 %v414, %v413
    %v485 = vpack.c.b16 %v416, %v415
    %v486 = vpack.c.b16 %v418, %v417
    %v487 = vpack.c.b16 %v420, %v419
    %v488 = vpack.c.b16 %v422, %v421
    %v489 = vpack.c.b16 %v424, %v423
    %v490 = vpack.c.b16 %v426, %v425
    %v491 = vpack.c.b16 %v428, %v427
    %v492 = vpack.c.b16 %v430, %v429
    %v493 = vpack.c.b16 %v432, %v431
    %v494 = vpack.c.b16 %v434, %v433
    %v495 = vpack.c.b16 %v436, %v435
    %v496 = vpack.c.b16 %v438, %v437
    %v497 = vpack.c.b16 %v440, %v439
    %v498 = vpack.c.b16 %v442, %v441
    %v499 = vpack.c.b16 %v444, %v443
    %v500 = vpack.c.b16 %v446, %v445
    %v501 = vpack.c.b16 %v448, %v447
    %v502 = vpack.c.b16 %v450, %v449
    %v503 = vpack.c.b16 %v452, %v451
    %v504 = vpack.c.b16 %v454, %v453
    %v505 = vpack.c.b16 %v456, %v455
    %v506 = vpack.c.b16 %v458, %v457
    %555 = vmatprep.subr.bf16.mxu0 0
    %556 = vmatpush1.bf16.msra.mxu0 %v459
    %557 = vmatprep.subr.bf16.mxu0 0
    %558 = vmatpush1.bf16.msra.mxu0 %v460
    %559 = vmatprep.subr.bf16.mxu0 0
    %560 = vmatpush1.bf16.msra.mxu0 %v461
    %561 = vmatprep.subr.bf16.mxu0 0
    %562 = vmatpush1.bf16.msra.mxu0 %v462
    %563 = vmatprep.subr.bf16.mxu0 0
    %564 = vmatpush1.bf16.msra.mxu0 %v463
    %565 = vmatprep.subr.bf16.mxu0 0
    %566 = vmatpush1.bf16.msra.mxu0 %v464
    %567 = vmatprep.subr.bf16.mxu0 0
    %568 = vmatpush1.bf16.msra.mxu0 %v465
    %569 = vmatprep.subr.bf16.mxu0 0
    %570 = vmatpush1.bf16.msra.mxu0 %v466
    %571 = vmatprep.subr.bf16.mxu0 0
    %572 = vmatpush1.bf16.msra.mxu0 %v467
    %573 = vmatprep.subr.bf16.mxu0 0
    %574 = vmatpush1.bf16.msra.mxu0 %v468
    %575 = vmatprep.subr.bf16.mxu0 0
    %576 = vmatpush1.bf16.msra.mxu0 %v469
    %577 = vmatprep.subr.bf16.mxu0 0
    %578 = vmatpush1.bf16.msra.mxu0 %v470
    %579 = vmatprep.subr.bf16.mxu0 0
    %580 = vmatpush1.bf16.msra.mxu0 %v471
    %581 = vmatprep.subr.bf16.mxu0 0
    %582 = vmatpush1.bf16.msra.mxu0 %v472
    %583 = vmatprep.subr.bf16.mxu0 0
    %584 = vmatpush1.bf16.msra.mxu0 %v473
    %585 = vmatprep.subr.bf16.mxu0 0
    %586 = vmatpush1.bf16.msra.mxu0 %v474
    %587 = vmatprep.mubr.bf16.mxu0 %v251
    %588 = vmatmul.mubr.bf16.gmra.mrb[0].mxu0 %v237
    %v589 = vpop.f32.mrb[0].mxu0
    %v590 = vadd.f32 0.0, %v589
    %v591 = vpop.f32.mrb[0].mxu0
    %v592 = vpop.f32.mrb[0].mxu0
    %v593 = vpop.f32.mrb[0].mxu0
    %594 = vdwg.mxu0
    %595 = vmatprep.subr.bf16.mxu0 0
    %596 = vmatpush1.bf16.msra.mxu0 %v475
    %597 = vmatprep.subr.bf16.mxu0 0
    %598 = vmatpush1.bf16.msra.mxu0 %v476
    %599 = vmatprep.subr.bf16.mxu0 0
    %600 = vmatpush1.bf16.msra.mxu0 %v477
    %601 = vmatprep.subr.bf16.mxu0 0
    %602 = vmatpush1.bf16.msra.mxu0 %v478
    %603 = vmatprep.subr.bf16.mxu0 0
    %604 = vmatpush1.bf16.msra.mxu0 %v479
    %605 = vmatprep.subr.bf16.mxu0 0
    %606 = vmatpush1.bf16.msra.mxu0 %v480
    %607 = vmatprep.subr.bf16.mxu0 0
    %608 = vmatpush1.bf16.msra.mxu0 %v481
    %609 = vmatprep.subr.bf16.mxu0 0
    %610 = vmatpush1.bf16.msra.mxu0 %v482
    %611 = vmatprep.subr.bf16.mxu0 0
    %612 = vmatpush1.bf16.msra.mxu0 %v483
    %613 = vmatprep.subr.bf16.mxu0 0
    %614 = vmatpush1.bf16.msra.mxu0 %v484
    %615 = vmatprep.subr.bf16.mxu0 0
    %616 = vmatpush1.bf16.msra.mxu0 %v485
    %617 = vmatprep.subr.bf16.mxu0 0
    %618 = vmatpush1.bf16.msra.mxu0 %v486
    %619 = vmatprep.subr.bf16.mxu0 0
    %620 = vmatpush1.bf16.msra.mxu0 %v487
    %621 = vmatprep.subr.bf16.mxu0 0
    %622 = vmatpush1.bf16.msra.mxu0 %v488
    %623 = vmatprep.subr.bf16.mxu0 0
    %624 = vmatpush1.bf16.msra.mxu0 %v489
    %625 = vmatprep.subr.bf16.mxu0 0
    %626 = vmatpush1.bf16.msra.mxu0 %v490
    %627 = vmatprep.mubr.bf16.mxu0 %v260
    %628 = vmatmul.mubr.bf16.gmra.mrb[0].mxu0 %v259
    %v629 = vpop.f32.mrb[0].mxu0
    %v630 = vadd.f32 %v590, %v629
    %v631 = vpop.f32.mrb[0].mxu0
    %v632 = vpop.f32.mrb[0].mxu0
    %v633 = vpop.f32.mrb[0].mxu0
    %634 = vdwg.mxu0
    %635 = vmatprep.subr.bf16.mxu0 0
    %636 = vmatpush1.bf16.msra.mxu0 %v491
    %637 = vmatprep.subr.bf16.mxu0 0
    %638 = vmatpush1.bf16.msra.mxu0 %v492
    %639 = vmatprep.subr.bf16.mxu0 0
    %640 = vmatpush1.bf16.msra.mxu0 %v493
    %641 = vmatprep.subr.bf16.mxu0 0
    %642 = vmatpush1.bf16.msra.mxu0 %v494
    %643 = vmatprep.subr.bf16.mxu0 0
    %644 = vmatpush1.bf16.msra.mxu0 %v495
    %645 = vmatprep.subr.bf16.mxu0 0
    %646 = vmatpush1.bf16.msra.mxu0 %v496
    %647 = vmatprep.subr.bf16.mxu0 0
    %648 = vmatpush1.bf16.msra.mxu0 %v497
    %649 = vmatprep.subr.bf16.mxu0 0
    %650 = vmatpush1.bf16.msra.mxu0 %v498
    %651 = vmatprep.subr.bf16.mxu0 0
    %652 = vmatpush1.bf16.msra.mxu0 %v499
    %653 = vmatprep.subr.bf16.mxu0 0
    %654 = vmatpush1.bf16.msra.mxu0 %v500
    %655 = vmatprep.subr.bf16.mxu0 0
    %656 = vmatpush1.bf16.msra.mxu0 %v501
    %657 = vmatprep.subr.bf16.mxu0 0
    %658 = vmatpush1.bf16.msra.mxu0 %v502
    %659 = vmatprep.subr.bf16.mxu0 0
    %660 = vmatpush1.bf16.msra.mxu0 %v503
    %661 = vmatprep.subr.bf16.mxu0 0
    %662 = vmatpush1.bf16.msra.mxu0 %v504
    %663 = vmatprep.subr.bf16.mxu0 0
    %664 = vmatpush1.bf16.msra.mxu0 %v505
    %665 = vmatprep.subr.bf16.mxu0 0
    %666 = vmatpush1.bf16.msra.mxu0 %v506
    %667 = vmatprep.mubr.bf16.mxu0 %v258
    %668 = vmatmul.mubr.bf16.gmra.mrb[0].mxu0 %v244
    %v669 = vpop.f32.mrb[0].mxu0
    %v670 = vadd.f32 %v630, %v669
    %v671 = vpop.f32.mrb[0].mxu0
    %v672 = vpop.f32.mrb[0].mxu0
    %v673 = vpop.f32.mrb[0].mxu0
    %674 = vdwg.mxu0
    %v676 = vcombine.high %v211, %v211
    %v678 = vunpack.c.l.s4 1966171168
    %v679 = vunpack.c.0.s8 %v678
    %v680 = vlaneseq
    %v681 = vshrl.u32 %v680, 7
    %v682 = vsub.s32 %v679, %v681
    %v683 = vrot.slane %v211, %v682
    %v685 = vunpack.c.l.s4 1966171168
    %v686 = vunpack.c.0.s8 %v685
    %v687 = vlaneseq
    %v688 = vshrl.u32 %v687, 7
    %v689 = vsub.s32 %v686, %v688
    %v690 = vrot.slane %v676, %v689
    %v691 = vcombine.high %v683, %v683
    %v692 = vcombine.high %v690, %v690
    %v694 = vunpack.c.l.s4 1966171168
    %v695 = vunpack.c.0.s8 %v694
    %v696 = vlaneseq
    %v697 = vshrl.u32 %v696, 7
    %v698 = vsub.s32 %v695, %v697
    %v699 = vrot.slane %v683, %v698
    %v701 = vunpack.c.l.s4 1966171168
    %v702 = vunpack.c.0.s8 %v701
    %v703 = vlaneseq
    %v704 = vshrl.u32 %v703, 7
    %v705 = vsub.s32 %v702, %v704
    %v706 = vrot.slane %v690, %v705
    %v708 = vunpack.c.l.s4 1966171168
    %v709 = vunpack.c.0.s8 %v708
    %v710 = vlaneseq
    %v711 = vshrl.u32 %v710, 7
    %v712 = vsub.s32 %v709, %v711
    %v713 = vrot.slane %v691, %v712
    %v715 = vunpack.c.l.s4 1966171168
    %v716 = vunpack.c.0.s8 %v715
    %v717 = vlaneseq
    %v718 = vshrl.u32 %v717, 7
    %v719 = vsub.s32 %v716, %v718
    %v720 = vrot.slane %v692, %v719
    %v721 = vcombine.high %v699, %v699
    %v722 = vcombine.high %v713, %v713
    %v825 = vunpack.c.l.b16 %v19
    %v826 = vunpack.c.l.b16 %v20
    %v827 = vunpack.c.l.b16 %v21
    %v828 = vunpack.c.l.b16 %v22
    %v829 = vunpack.c.l.b16 %v23
    %v830 = vunpack.c.l.b16 %v24
    %v831 = vunpack.c.l.b16 %v25
    %v832 = vunpack.c.l.b16 %v26
    %v833 = vunpack.c.l.b16 %v27
    %v834 = vunpack.c.l.b16 %v28
    %v835 = vunpack.c.l.b16 %v29
    %v836 = vunpack.c.l.b16 %v30
    %v837 = vunpack.c.l.b16 %v31
    %v838 = vunpack.c.l.b16 %v32
    %v839 = vunpack.c.l.b16 %v33
    %v840 = vunpack.c.l.b16 %v34
    %v841 = vunpack.c.l.b16 %v35
    %v842 = vunpack.c.l.b16 %v36
    %v843 = vunpack.c.l.b16 %v37
    %v844 = vunpack.c.l.b16 %v38
    %v845 = vunpack.c.l.b16 %v39
    %v846 = vunpack.c.l.b16 %v40
    %v847 = vunpack.c.l.b16 %v41
    %v848 = vunpack.c.l.b16 %v42
    %v849 = vunpack.c.l.b16 %v43
    %v850 = vunpack.c.l.b16 %v44
    %v851 = vunpack.c.l.b16 %v45
    %v852 = vunpack.c.l.b16 %v46
    %v853 = vunpack.c.l.b16 %v47
    %v854 = vunpack.c.l.b16 %v48
    %v855 = vunpack.c.l.b16 %v49
    %v856 = vunpack.c.l.b16 %v50
    %v857 = vunpack.c.l.b16 %v51
    %v858 = vunpack.c.l.b16 %v52
    %v859 = vunpack.c.l.b16 %v53
    %v860 = vunpack.c.l.b16 %v54
    %v861 = vunpack.c.l.b16 %v55
    %v862 = vunpack.c.l.b16 %v56
    %v863 = vunpack.c.l.b16 %v57
    %v864 = vunpack.c.l.b16 %v58
    %v865 = vunpack.c.l.b16 %v59
    %v866 = vunpack.c.l.b16 %v60
    %v867 = vunpack.c.l.b16 %v61
    %v868 = vunpack.c.l.b16 %v62
    %v869 = vunpack.c.l.b16 %v63
    %v870 = vunpack.c.l.b16 %v64
    %v871 = vunpack.c.l.b16 %v65
    %v872 = vunpack.c.l.b16 %v66
    %v873 = vunpack.c.l.b16 %v67
    %v874 = vunpack.c.l.b16 %v68
    %v875 = vunpack.c.l.b16 %v69
    %v876 = vunpack.c.l.b16 %v70
    %v877 = vunpack.c.l.b16 %v71
    %v878 = vunpack.c.l.b16 %v72
    %v879 = vunpack.c.l.b16 %v73
    %v880 = vunpack.c.l.b16 %v74
    %v881 = vunpack.c.l.b16 %v75
    %v882 = vunpack.c.l.b16 %v76
    %v883 = vunpack.c.l.b16 %v77
    %v884 = vunpack.c.l.b16 %v78
    %v885 = vunpack.c.l.b16 %v79
    %v886 = vunpack.c.l.b16 %v80
    %v887 = vunpack.c.l.b16 %v81
    %v888 = vunpack.c.l.b16 %v82
    %v889 = vunpack.c.l.b16 %v83
    %v890 = vunpack.c.l.b16 %v84
    %v891 = vunpack.c.l.b16 %v85
    %v892 = vunpack.c.l.b16 %v86
    %v893 = vunpack.c.l.b16 %v87
    %v894 = vunpack.c.l.b16 %v88
    %v895 = vunpack.c.l.b16 %v89
    %v896 = vunpack.c.l.b16 %v90
    %v897 = vunpack.c.l.b16 %v91
    %v898 = vunpack.c.l.b16 %v92
    %v899 = vunpack.c.l.b16 %v93
    %v900 = vunpack.c.l.b16 %v94
    %v901 = vunpack.c.l.b16 %v95
    %v902 = vunpack.c.l.b16 %v96
    %v903 = vunpack.c.l.b16 %v97
    %v904 = vunpack.c.l.b16 %v98
    %v905 = vunpack.c.l.b16 %v99
    %v906 = vunpack.c.l.b16 %v100
    %v907 = vunpack.c.l.b16 %v101
    %v908 = vunpack.c.l.b16 %v102
    %v909 = vunpack.c.l.b16 %v103
    %v910 = vunpack.c.l.b16 %v104
    %v911 = vunpack.c.l.b16 %v105
    %v912 = vunpack.c.l.b16 %v106
    %v913 = vunpack.c.l.b16 %v107
    %v914 = vunpack.c.l.b16 %v108
    %v915 = vunpack.c.l.b16 %v109
    %v916 = vunpack.c.l.b16 %v110
    %v917 = vunpack.c.l.b16 %v111
    %v918 = vunpack.c.l.b16 %v112
    %v919 = vunpack.c.l.b16 %v113
    %v920 = vunpack.c.l.b16 %v114
    %v921 = vpack.c.b16 %v826, %v825
    %v922 = vpack.c.b16 %v828, %v827
    %v923 = vpack.c.b16 %v830, %v829
    %v924 = vpack.c.b16 %v832, %v831
    %v925 = vpack.c.b16 %v834, %v833
    %v926 = vpack.c.b16 %v836, %v835
    %v927 = vpack.c.b16 %v838, %v837
    %v928 = vpack.c.b16 %v840, %v839
    %v929 = vpack.c.b16 %v842, %v841
    %v930 = vpack.c.b16 %v844, %v843
    %v931 = vpack.c.b16 %v846, %v845
    %v932 = vpack.c.b16 %v848, %v847
    %v933 = vpack.c.b16 %v850, %v849
    %v934 = vpack.c.b16 %v852, %v851
    %v935 = vpack.c.b16 %v854, %v853
    %v936 = vpack.c.b16 %v856, %v855
    %v937 = vpack.c.b16 %v858, %v857
    %v938 = vpack.c.b16 %v860, %v859
    %v939 = vpack.c.b16 %v862, %v861
    %v940 = vpack.c.b16 %v864, %v863
    %v941 = vpack.c.b16 %v866, %v865
    %v942 = vpack.c.b16 %v868, %v867
    %v943 = vpack.c.b16 %v870, %v869
    %v944 = vpack.c.b16 %v872, %v871
    %v945 = vpack.c.b16 %v874, %v873
    %v946 = vpack.c.b16 %v876, %v875
    %v947 = vpack.c.b16 %v878, %v877
    %v948 = vpack.c.b16 %v880, %v879
    %v949 = vpack.c.b16 %v882, %v881
    %v950 = vpack.c.b16 %v884, %v883
    %v951 = vpack.c.b16 %v886, %v885
    %v952 = vpack.c.b16 %v888, %v887
    %v953 = vpack.c.b16 %v890, %v889
    %v954 = vpack.c.b16 %v892, %v891
    %v955 = vpack.c.b16 %v894, %v893
    %v956 = vpack.c.b16 %v896, %v895
    %v957 = vpack.c.b16 %v898, %v897
    %v958 = vpack.c.b16 %v900, %v899
    %v959 = vpack.c.b16 %v902, %v901
    %v960 = vpack.c.b16 %v904, %v903
    %v961 = vpack.c.b16 %v906, %v905
    %v962 = vpack.c.b16 %v908, %v907
    %v963 = vpack.c.b16 %v910, %v909
    %v964 = vpack.c.b16 %v912, %v911
    %v965 = vpack.c.b16 %v914, %v913
    %v966 = vpack.c.b16 %v916, %v915
    %v967 = vpack.c.b16 %v918, %v917
    %v968 = vpack.c.b16 %v920, %v919
    %1017 = vmatprep.subr.bf16.mxu0 0
    %1018 = vmatpush1.bf16.msra.mxu0 %v921
    %1019 = vmatprep.subr.bf16.mxu0 0
    %1020 = vmatpush1.bf16.msra.mxu0 %v922
    %1021 = vmatprep.subr.bf16.mxu0 0
    %1022 = vmatpush1.bf16.msra.mxu0 %v923
    %1023 = vmatprep.subr.bf16.mxu0 0
    %1024 = vmatpush1.bf16.msra.mxu0 %v924
    %1025 = vmatprep.subr.bf16.mxu0 0
    %1026 = vmatpush1.bf16.msra.mxu0 %v925
    %1027 = vmatprep.subr.bf16.mxu0 0
    %1028 = vmatpush1.bf16.msra.mxu0 %v926
    %1029 = vmatprep.subr.bf16.mxu0 0
    %1030 = vmatpush1.bf16.msra.mxu0 %v927
    %1031 = vmatprep.subr.bf16.mxu0 0
    %1032 = vmatpush1.bf16.msra.mxu0 %v928
    %1033 = vmatprep.subr.bf16.mxu0 0
    %1034 = vmatpush1.bf16.msra.mxu0 %v929
    %1035 = vmatprep.subr.bf16.mxu0 0
    %1036 = vmatpush1.bf16.msra.mxu0 %v930
    %1037 = vmatprep.subr.bf16.mxu0 0
    %1038 = vmatpush1.bf16.msra.mxu0 %v931
    %1039 = vmatprep.subr.bf16.mxu0 0
    %1040 = vmatpush1.bf16.msra.mxu0 %v932
    %1041 = vmatprep.subr.bf16.mxu0 0
    %1042 = vmatpush1.bf16.msra.mxu0 %v933
    %1043 = vmatprep.subr.bf16.mxu0 0
    %1044 = vmatpush1.bf16.msra.mxu0 %v934
    %1045 = vmatprep.subr.bf16.mxu0 0
    %1046 = vmatpush1.bf16.msra.mxu0 %v935
    %1047 = vmatprep.subr.bf16.mxu0 0
    %1048 = vmatpush1.bf16.msra.mxu0 %v936
    %1049 = vmatprep.mubr.bf16.mxu0 %v713
    %1050 = vmatmul.mubr.bf16.gmra.mrb[0].mxu0 %v699
    %v1051 = vpop.f32.mrb[0].mxu0
    %v1052 = vadd.f32 %v670, %v1051
    %v1053 = vpop.f32.mrb[0].mxu0
    %v1054 = vpop.f32.mrb[0].mxu0
    %v1055 = vpop.f32.mrb[0].mxu0
    %1056 = vdwg.mxu0
    %1057 = vmatprep.subr.bf16.mxu0 0
    %1058 = vmatpush1.bf16.msra.mxu0 %v937
    %1059 = vmatprep.subr.bf16.mxu0 0
    %1060 = vmatpush1.bf16.msra.mxu0 %v938
    %1061 = vmatprep.subr.bf16.mxu0 0
    %1062 = vmatpush1.bf16.msra.mxu0 %v939
    %1063 = vmatprep.subr.bf16.mxu0 0
    %1064 = vmatpush1.bf16.msra.mxu0 %v940
    %1065 = vmatprep.subr.bf16.mxu0 0
    %1066 = vmatpush1.bf16.msra.mxu0 %v941
    %1067 = vmatprep.subr.bf16.mxu0 0
    %1068 = vmatpush1.bf16.msra.mxu0 %v942
    %1069 = vmatprep.subr.bf16.mxu0 0
    %1070 = vmatpush1.bf16.msra.mxu0 %v943
    %1071 = vmatprep.subr.bf16.mxu0 0
    %1072 = vmatpush1.bf16.msra.mxu0 %v944
    %1073 = vmatprep.subr.bf16.mxu0 0
    %1074 = vmatpush1.bf16.msra.mxu0 %v945
    %1075 = vmatprep.subr.bf16.mxu0 0
    %1076 = vmatpush1.bf16.msra.mxu0 %v946
    %1077 = vmatprep.subr.bf16.mxu0 0
    %1078 = vmatpush1.bf16.msra.mxu0 %v947
    %1079 = vmatprep.subr.bf16.mxu0 0
    %1080 = vmatpush1.bf16.msra.mxu0 %v948
    %1081 = vmatprep.subr.bf16.mxu0 0
    %1082 = vmatpush1.bf16.msra.mxu0 %v949
    %1083 = vmatprep.subr.bf16.mxu0 0
    %1084 = vmatpush1.bf16.msra.mxu0 %v950
    %1085 = vmatprep.subr.bf16.mxu0 0
    %1086 = vmatpush1.bf16.msra.mxu0 %v951
    %1087 = vmatprep.subr.bf16.mxu0 0
    %1088 = vmatpush1.bf16.msra.mxu0 %v952
    %1089 = vmatprep.mubr.bf16.mxu0 %v722
    %1090 = vmatmul.mubr.bf16.gmra.mrb[0].mxu0 %v721
    %v1091 = vpop.f32.mrb[0].mxu0
    %v1092 = vadd.f32 %v1052, %v1091
    %v1093 = vpop.f32.mrb[0].mxu0
    %v1094 = vpop.f32.mrb[0].mxu0
    %v1095 = vpop.f32.mrb[0].mxu0
    %1096 = vdwg.mxu0
    %1097 = vmatprep.subr.bf16.mxu0 0
    %1098 = vmatpush1.bf16.msra.mxu0 %v953
    %1099 = vmatprep.subr.bf16.mxu0 0
    %1100 = vmatpush1.bf16.msra.mxu0 %v954
    %1101 = vmatprep.subr.bf16.mxu0 0
    %1102 = vmatpush1.bf16.msra.mxu0 %v955
    %1103 = vmatprep.subr.bf16.mxu0 0
    %1104 = vmatpush1.bf16.msra.mxu0 %v956
    %1105 = vmatprep.subr.bf16.mxu0 0
    %1106 = vmatpush1.bf16.msra.mxu0 %v957
    %1107 = vmatprep.subr.bf16.mxu0 0
    %1108 = vmatpush1.bf16.msra.mxu0 %v958
    %1109 = vmatprep.subr.bf16.mxu0 0
    %1110 = vmatpush1.bf16.msra.mxu0 %v959
    %1111 = vmatprep.subr.bf16.mxu0 0
    %1112 = vmatpush1.bf16.msra.mxu0 %v960
    %1113 = vmatprep.subr.bf16.mxu0 0
    %1114 = vmatpush1.bf16.msra.mxu0 %v961
    %1115 = vmatprep.subr.bf16.mxu0 0
    %1116 = vmatpush1.bf16.msra.mxu0 %v962
    %1117 = vmatprep.subr.bf16.mxu0 0
    %1118 = vmatpush1.bf16.msra.mxu0 %v963
    %1119 = vmatprep.subr.bf16.mxu0 0
    %1120 = vmatpush1.bf16.msra.mxu0 %v964
    %1121 = vmatprep.subr.bf16.mxu0 0
    %1122 = vmatpush1.bf16.msra.mxu0 %v965
    %1123 = vmatprep.subr.bf16.mxu0 0
    %1124 = vmatpush1.bf16.msra.mxu0 %v966
    %1125 = vmatprep.subr.bf16.mxu0 0
    %1126 = vmatpush1.bf16.msra.mxu0 %v967
    %1127 = vmatprep.subr.bf16.mxu0 0
    %1128 = vmatpush1.bf16.msra.mxu0 %v968
    %1129 = vmatprep.mubr.bf16.mxu0 %v720
    %1130 = vmatmul.mubr.bf16.gmra.mrb[0].mxu0 %v706
    %v1131 = vpop.f32.mrb[0].mxu0
    %v1132 = vadd.f32 %v1092, %v1131
    %v1133 = vpop.f32.mrb[0].mxu0
    %v1134 = vpop.f32.mrb[0].mxu0
    %v1135 = vpop.f32.mrb[0].mxu0
    %1136 = vdwg.mxu0
    %s1137 = scalar_lea.vmem %s0, 6
    %v1138 = vld [vmem:[%s1137] sm:$0x3f]
    %v1140 = vcombine.high %v1138, %v1138
    %v1142 = vunpack.c.l.s4 1966171168
    %v1143 = vunpack.c.0.s8 %v1142
    %v1144 = vlaneseq
    %v1145 = vshrl.u32 %v1144, 7
    %v1146 = vsub.s32 %v1143, %v1145
    %v1147 = vrot.slane %v1138, %v1146
    %v1149 = vunpack.c.l.s4 1966171168
    %v1150 = vunpack.c.0.s8 %v1149
    %v1151 = vlaneseq
    %v1152 = vshrl.u32 %v1151, 7
    %v1153 = vsub.s32 %v1150, %v1152
    %v1154 = vrot.slane %v1140, %v1153
    %v1155 = vcombine.high %v1147, %v1147
    %v1156 = vcombine.high %v1154, %v1154
    %v1158 = vunpack.c.l.s4 1966171168
    %v1159 = vunpack.c.0.s8 %v1158
    %v1160 = vlaneseq
    %v1161 = vshrl.u32 %v1160, 7
    %v1162 = vsub.s32 %v1159, %v1161
    %v1163 = vrot.slane %v1147, %v1162
    %v1165 = vunpack.c.l.s4 1966171168
    %v1166 = vunpack.c.0.s8 %v1165
    %v1167 = vlaneseq
    %v1168 = vshrl.u32 %v1167, 7
    %v1169 = vsub.s32 %v1166, %v1168
    %v1170 = vrot.slane %v1154, %v1169
    %v1172 = vunpack.c.l.s4 1966171168
    %v1173 = vunpack.c.0.s8 %v1172
    %v1174 = vlaneseq
    %v1175 = vshrl.u32 %v1174, 7
    %v1176 = vsub.s32 %v1173, %v1175
    %v1177 = vrot.slane %v1155, %v1176
    %v1179 = vunpack.c.l.s4 1966171168
    %v1180 = vunpack.c.0.s8 %v1179
    %v1181 = vlaneseq
    %v1182 = vshrl.u32 %v1181, 7
    %v1183 = vsub.s32 %v1180, %v1182
    %v1184 = vrot.slane %v1156, %v1183
    %v1185 = vcombine.high %v1163, %v1163
    %v1186 = vcombine.high %v1177, %v1177
    %1193 = vmatprep.subr.bf16.mxu0 0
    %1194 = vmatpush1.bf16.msra.mxu0 %v921
    %1195 = vmatprep.subr.bf16.mxu0 0
    %1196 = vmatpush1.bf16.msra.mxu0 %v922
    %1197 = vmatprep.subr.bf16.mxu0 0
    %1198 = vmatpush1.bf16.msra.mxu0 %v923
    %1199 = vmatprep.subr.bf16.mxu0 0
    %1200 = vmatpush1.bf16.msra.mxu0 %v924
    %1201 = vmatprep.subr.bf16.mxu0 0
    %1202 = vmatpush1.bf16.msra.mxu0 %v925
    %1203 = vmatprep.subr.bf16.mxu0 0
    %1204 = vmatpush1.bf16.msra.mxu0 %v926
    %1205 = vmatprep.subr.bf16.mxu0 0
    %1206 = vmatpush1.bf16.msra.mxu0 %v927
    %1207 = vmatprep.subr.bf16.mxu0 0
    %1208 = vmatpush1.bf16.msra.mxu0 %v928
    %1209 = vmatprep.subr.bf16.mxu0 0
    %1210 = vmatpush1.bf16.msra.mxu0 %v929
    %1211 = vmatprep.subr.bf16.mxu0 0
    %1212 = vmatpush1.bf16.msra.mxu0 %v930
    %1213 = vmatprep.subr.bf16.mxu0 0
    %1214 = vmatpush1.bf16.msra.mxu0 %v931
    %1215 = vmatprep.subr.bf16.mxu0 0
    %1216 = vmatpush1.bf16.msra.mxu0 %v932
    %1217 = vmatprep.subr.bf16.mxu0 0
    %1218 = vmatpush1.bf16.msra.mxu0 %v933
    %1219 = vmatprep.subr.bf16.mxu0 0
    %1220 = vmatpush1.bf16.msra.mxu0 %v934
    %1221 = vmatprep.subr.bf16.mxu0 0
    %1222 = vmatpush1.bf16.msra.mxu0 %v935
    %1223 = vmatprep.subr.bf16.mxu0 0
    %1224 = vmatpush1.bf16.msra.mxu0 %v936
    %1225 = vmatprep.mubr.bf16.mxu0 %v1177
    %1226 = vmatmul.mubr.bf16.gmra.mrb[0].mxu0 %v1163
    %v1227 = vpop.f32.mrb[0].mxu0
    %v1228 = vadd.f32 0.0, %v1227
    %v1229 = vpop.f32.mrb[0].mxu0
    %v1230 = vpop.f32.mrb[0].mxu0
    %v1231 = vpop.f32.mrb[0].mxu0
    %1232 = vdwg.mxu0
    %1233 = vmatprep.subr.bf16.mxu0 0
    %1234 = vmatpush1.bf16.msra.mxu0 %v937
    %1235 = vmatprep.subr.bf16.mxu0 0
    %1236 = vmatpush1.bf16.msra.mxu0 %v938
    %1237 = vmatprep.subr.bf16.mxu0 0
    %1238 = vmatpush1.bf16.msra.mxu0 %v939
    %1239 = vmatprep.subr.bf16.mxu0 0
    %1240 = vmatpush1.bf16.msra.mxu0 %v940
    %1241 = vmatprep.subr.bf16.mxu0 0
    %1242 = vmatpush1.bf16.msra.mxu0 %v941
    %1243 = vmatprep.subr.bf16.mxu0 0
    %1244 = vmatpush1.bf16.msra.mxu0 %v942
    %1245 = vmatprep.subr.bf16.mxu0 0
    %1246 = vmatpush1.bf16.msra.mxu0 %v943
    %1247 = vmatprep.subr.bf16.mxu0 0
    %1248 = vmatpush1.bf16.msra.mxu0 %v944
    %1249 = vmatprep.subr.bf16.mxu0 0
    %1250 = vmatpush1.bf16.msra.mxu0 %v945
    %1251 = vmatprep.subr.bf16.mxu0 0
    %1252 = vmatpush1.bf16.msra.mxu0 %v946
    %1253 = vmatprep.subr.bf16.mxu0 0
    %1254 = vmatpush1.bf16.msra.mxu0 %v947
    %1255 = vmatprep.subr.bf16.mxu0 0
    %1256 = vmatpush1.bf16.msra.mxu0 %v948
    %1257 = vmatprep.subr.bf16.mxu0 0
    %1258 = vmatpush1.bf16.msra.mxu0 %v949
    %1259 = vmatprep.subr.bf16.mxu0 0
    %1260 = vmatpush1.bf16.msra.mxu0 %v950
    %1261 = vmatprep.subr.bf16.mxu0 0
    %1262 = vmatpush1.bf16.msra.mxu0 %v951
    %1263 = vmatprep.subr.bf16.mxu0 0
    %1264 = vmatpush1.bf16.msra.mxu0 %v952
    %1265 = vmatprep.mubr.bf16.mxu0 %v1186
    %1266 = vmatmul.mubr.bf16.gmra.mrb[0].mxu0 %v1185
    %v1267 = vpop.f32.mrb[0].mxu0
    %v1268 = vadd.f32 %v1228, %v1267
    %v1269 = vpop.f32.mrb[0].mxu0
    %v1270 = vpop.f32.mrb[0].mxu0
    %v1271 = vpop.f32.mrb[0].mxu0
    %1272 = vdwg.mxu0
    %1273 = vmatprep.subr.bf16.mxu0 0
    %1274 = vmatpush1.bf16.msra.mxu0 %v953
    %1275 = vmatprep.subr.bf16.mxu0 0
    %1276 = vmatpush1.bf16.msra.mxu0 %v954
    %1277 = vmatprep.subr.bf16.mxu0 0
    %1278 = vmatpush1.bf16.msra.mxu0 %v955
    %1279 = vmatprep.subr.bf16.mxu0 0
    %1280 = vmatpush1.bf16.msra.mxu0 %v956
    %1281 = vmatprep.subr.bf16.mxu0 0
    %1282 = vmatpush1.bf16.msra.mxu0 %v957
    %1283 = vmatprep.subr.bf16.mxu0 0
    %1284 = vmatpush1.bf16.msra.mxu0 %v958
    %1285 = vmatprep.subr.bf16.mxu0 0
    %1286 = vmatpush1.bf16.msra.mxu0 %v959
    %1287 = vmatprep.subr.bf16.mxu0 0
    %1288 = vmatpush1.bf16.msra.mxu0 %v960
    %1289 = vmatprep.subr.bf16.mxu0 0
    %1290 = vmatpush1.bf16.msra.mxu0 %v961
    %1291 = vmatprep.subr.bf16.mxu0 0
    %1292 = vmatpush1.bf16.msra.mxu0 %v962
    %1293 = vmatprep.subr.bf16.mxu0 0
    %1294 = vmatpush1.bf16.msra.mxu0 %v963
    %1295 = vmatprep.subr.bf16.mxu0 0
    %1296 = vmatpush1.bf16.msra.mxu0 %v964
    %1297 = vmatprep.subr.bf16.mxu0 0
    %1298 = vmatpush1.bf16.msra.mxu0 %v965
    %1299 = vmatprep.subr.bf16.mxu0 0
    %1300 = vmatpush1.bf16.msra.mxu0 %v966
    %1301 = vmatprep.subr.bf16.mxu0 0
    %1302 = vmatpush1.bf16.msra.mxu0 %v967
    %1303 = vmatprep.subr.bf16.mxu0 0
    %1304 = vmatpush1.bf16.msra.mxu0 %v968
    %1305 = vmatprep.mubr.bf16.mxu0 %v1184
    %1306 = vmatmul.mubr.bf16.gmra.mrb[0].mxu0 %v1170
    %v1307 = vpop.f32.mrb[0].mxu0
    %v1308 = vadd.f32 %v1268, %v1307
    %v1309 = vpop.f32.mrb[0].mxu0
    %v1310 = vpop.f32.mrb[0].mxu0
    %v1311 = vpop.f32.mrb[0].mxu0
    %1312 = vdwg.mxu0
    %v1313 = vadd.f32 %v1132, %v1308
    %s1314 = scalar_lea.vmem %s1, 6
    %v1315 = vld [vmem:[%s1314] sm:$0x3f]
    %v1317 = vcombine.high %v1315, %v1315
    %v1319 = vunpack.c.l.s4 1966171168
    %v1320 = vunpack.c.0.s8 %v1319
    %v1321 = vlaneseq
    %v1322 = vshrl.u32 %v1321, 7
    %v1323 = vsub.s32 %v1320, %v1322
    %v1324 = vrot.slane %v1315, %v1323
    %v1326 = vunpack.c.l.s4 1966171168
    %v1327 = vunpack.c.0.s8 %v1326
    %v1328 = vlaneseq
    %v1329 = vshrl.u32 %v1328, 7
    %v1330 = vsub.s32 %v1327, %v1329
    %v1331 = vrot.slane %v1317, %v1330
    %v1332 = vcombine.high %v1324, %v1324
    %v1333 = vcombine.high %v1331, %v1331
    %v1335 = vunpack.c.l.s4 1966171168
    %v1336 = vunpack.c.0.s8 %v1335
    %v1337 = vlaneseq
    %v1338 = vshrl.u32 %v1337, 7
    %v1339 = vsub.s32 %v1336, %v1338
    %v1340 = vrot.slane %v1324, %v1339
    %v1342 = vunpack.c.l.s4 1966171168
    %v1343 = vunpack.c.0.s8 %v1342
    %v1344 = vlaneseq
    %v1345 = vshrl.u32 %v1344, 7
    %v1346 = vsub.s32 %v1343, %v1345
    %v1347 = vrot.slane %v1331, %v1346
    %v1349 = vunpack.c.l.s4 1966171168
    %v1350 = vunpack.c.0.s8 %v1349
    %v1351 = vlaneseq
    %v1352 = vshrl.u32 %v1351, 7
    %v1353 = vsub.s32 %v1350, %v1352
    %v1354 = vrot.slane %v1332, %v1353
    %v1356 = vunpack.c.l.s4 1966171168
    %v1357 = vunpack.c.0.s8 %v1356
    %v1358 = vlaneseq
    %v1359 = vshrl.u32 %v1358, 7
    %v1360 = vsub.s32 %v1357, %v1359
    %v1361 = vrot.slane %v1333, %v1360
    %v1362 = vcombine.high %v1340, %v1340
    %v1363 = vcombine.high %v1354, %v1354
    %1370 = vmatprep.subr.bf16.mxu0 0
    %1371 = vmatpush1.bf16.msra.mxu0 %v459
    %1372 = vmatprep.subr.bf16.mxu0 0
    %1373 = vmatpush1.bf16.msra.mxu0 %v460
    %1374 = vmatprep.subr.bf16.mxu0 0
    %1375 = vmatpush1.bf16.msra.mxu0 %v461
    %1376 = vmatprep.subr.bf16.mxu0 0
    %1377 = vmatpush1.bf16.msra.mxu0 %v462
    %1378 = vmatprep.subr.bf16.mxu0 0
    %1379 = vmatpush1.bf16.msra.mxu0 %v463
    %1380 = vmatprep.subr.bf16.mxu0 0
    %1381 = vmatpush1.bf16.msra.mxu0 %v464
    %1382 = vmatprep.subr.bf16.mxu0 0
    %1383 = vmatpush1.bf16.msra.mxu0 %v465
    %1384 = vmatprep.subr.bf16.mxu0 0
    %1385 = vmatpush1.bf16.msra.mxu0 %v466
    %1386 = vmatprep.subr.bf16.mxu0 0
    %1387 = vmatpush1.bf16.msra.mxu0 %v467
    %1388 = vmatprep.subr.bf16.mxu0 0
    %1389 = vmatpush1.bf16.msra.mxu0 %v468
    %1390 = vmatprep.subr.bf16.mxu0 0
    %1391 = vmatpush1.bf16.msra.mxu0 %v469
    %1392 = vmatprep.subr.bf16.mxu0 0
    %1393 = vmatpush1.bf16.msra.mxu0 %v470
    %1394 = vmatprep.subr.bf16.mxu0 0
    %1395 = vmatpush1.bf16.msra.mxu0 %v471
    %1396 = vmatprep.subr.bf16.mxu0 0
    %1397 = vmatpush1.bf16.msra.mxu0 %v472
    %1398 = vmatprep.subr.bf16.mxu0 0
    %1399 = vmatpush1.bf16.msra.mxu0 %v473
    %1400 = vmatprep.subr.bf16.mxu0 0
    %1401 = vmatpush1.bf16.msra.mxu0 %v474
    %1402 = vmatprep.mubr.bf16.mxu0 %v1354
    %1403 = vmatmul.mubr.bf16.gmra.mrb[0].mxu0 %v1340
    %v1404 = vpop.f32.mrb[0].mxu0
    %v1405 = vadd.f32 0.0, %v1404
    %v1406 = vpop.f32.mrb[0].mxu0
    %v1407 = vpop.f32.mrb[0].mxu0
    %v1408 = vpop.f32.mrb[0].mxu0
    %1409 = vdwg.mxu0
    %1410 = vmatprep.subr.bf16.mxu0 0
    %1411 = vmatpush1.bf16.msra.mxu0 %v475
    %1412 = vmatprep.subr.bf16.mxu0 0
    %1413 = vmatpush1.bf16.msra.mxu0 %v476
    %1414 = vmatprep.subr.bf16.mxu0 0
    %1415 = vmatpush1.bf16.msra.mxu0 %v477
    %1416 = vmatprep.subr.bf16.mxu0 0
    %1417 = vmatpush1.bf16.msra.mxu0 %v478
    %1418 = vmatprep.subr.bf16.mxu0 0
    %1419 = vmatpush1.bf16.msra.mxu0 %v479
    %1420 = vmatprep.subr.bf16.mxu0 0
    %1421 = vmatpush1.bf16.msra.mxu0 %v480
    %1422 = vmatprep.subr.bf16.mxu0 0
    %1423 = vmatpush1.bf16.msra.mxu0 %v481
    %1424 = vmatprep.subr.bf16.mxu0 0
    %1425 = vmatpush1.bf16.msra.mxu0 %v482
    %1426 = vmatprep.subr.bf16.mxu0 0
    %1427 = vmatpush1.bf16.msra.mxu0 %v483
    %1428 = vmatprep.subr.bf16.mxu0 0
    %1429 = vmatpush1.bf16.msra.mxu0 %v484
    %1430 = vmatprep.subr.bf16.mxu0 0
    %1431 = vmatpush1.bf16.msra.mxu0 %v485
    %1432 = vmatprep.subr.bf16.mxu0 0
    %1433 = vmatpush1.bf16.msra.mxu0 %v486
    %1434 = vmatprep.subr.bf16.mxu0 0
    %1435 = vmatpush1.bf16.msra.mxu0 %v487
    %1436 = vmatprep.subr.bf16.mxu0 0
    %1437 = vmatpush1.bf16.msra.mxu0 %v488
    %1438 = vmatprep.subr.bf16.mxu0 0
    %1439 = vmatpush1.bf16.msra.mxu0 %v489
    %1440 = vmatprep.subr.bf16.mxu0 0
    %1441 = vmatpush1.bf16.msra.mxu0 %v490
    %1442 = vmatprep.mubr.bf16.mxu0 %v1363
    %1443 = vmatmul.mubr.bf16.gmra.mrb[0].mxu0 %v1362
    %v1444 = vpop.f32.mrb[0].mxu0
    %v1445 = vadd.f32 %v1405, %v1444
    %v1446 = vpop.f32.mrb[0].mxu0
    %v1447 = vpop.f32.mrb[0].mxu0
    %v1448 = vpop.f32.mrb[0].mxu0
    %1449 = vdwg.mxu0
    %1450 = vmatprep.subr.bf16.mxu0 0
    %1451 = vmatpush1.bf16.msra.mxu0 %v491
    %1452 = vmatprep.subr.bf16.mxu0 0
    %1453 = vmatpush1.bf16.msra.mxu0 %v492
    %1454 = vmatprep.subr.bf16.mxu0 0
    %1455 = vmatpush1.bf16.msra.mxu0 %v493
    %1456 = vmatprep.subr.bf16.mxu0 0
    %1457 = vmatpush1.bf16.msra.mxu0 %v494
    %1458 = vmatprep.subr.bf16.mxu0 0
    %1459 = vmatpush1.bf16.msra.mxu0 %v495
    %1460 = vmatprep.subr.bf16.mxu0 0
    %1461 = vmatpush1.bf16.msra.mxu0 %v496
    %1462 = vmatprep.subr.bf16.mxu0 0
    %1463 = vmatpush1.bf16.msra.mxu0 %v497
    %1464 = vmatprep.subr.bf16.mxu0 0
    %1465 = vmatpush1.bf16.msra.mxu0 %v498
    %1466 = vmatprep.subr.bf16.mxu0 0
    %1467 = vmatpush1.bf16.msra.mxu0 %v499
    %1468 = vmatprep.subr.bf16.mxu0 0
    %1469 = vmatpush1.bf16.msra.mxu0 %v500
    %1470 = vmatprep.subr.bf16.mxu0 0
    %1471 = vmatpush1.bf16.msra.mxu0 %v501
    %1472 = vmatprep.subr.bf16.mxu0 0
    %1473 = vmatpush1.bf16.msra.mxu0 %v502
    %1474 = vmatprep.subr.bf16.mxu0 0
    %1475 = vmatpush1.bf16.msra.mxu0 %v503
    %1476 = vmatprep.subr.bf16.mxu0 0
    %1477 = vmatpush1.bf16.msra.mxu0 %v504
    %1478 = vmatprep.subr.bf16.mxu0 0
    %1479 = vmatpush1.bf16.msra.mxu0 %v505
    %1480 = vmatprep.subr.bf16.mxu0 0
    %1481 = vmatpush1.bf16.msra.mxu0 %v506
    %1482 = vmatprep.mubr.bf16.mxu0 %v1361
    %1483 = vmatmul.mubr.bf16.gmra.mrb[0].mxu0 %v1347
    %v1484 = vpop.f32.mrb[0].mxu0
    %v1485 = vadd.f32 %v1445, %v1484
    %v1486 = vpop.f32.mrb[0].mxu0
    %v1487 = vpop.f32.mrb[0].mxu0
    %v1488 = vpop.f32.mrb[0].mxu0
    %1489 = vdwg.mxu0
    %v1490 = vadd.f32 %v1313, %v1485
    %s1491 = scalar_lea.vmem %s0, 12
    %v1492 = vld [vmem:[%s1491] sm:$0x3f]
    %v1494 = vcombine.high %v1492, %v1492
    %v1496 = vunpack.c.l.s4 1966171168
    %v1497 = vunpack.c.0.s8 %v1496
    %v1498 = vlaneseq
    %v1499 = vshrl.u32 %v1498, 7
    %v1500 = vsub.s32 %v1497, %v1499
    %v1501 = vrot.slane %v1492, %v1500
    %v1503 = vunpack.c.l.s4 1966171168
    %v1504 = vunpack.c.0.s8 %v1503
    %v1505 = vlaneseq
    %v1506 = vshrl.u32 %v1505, 7
    %v1507 = vsub.s32 %v1504, %v1506
    %v1508 = vrot.slane %v1494, %v1507
    %v1509 = vcombine.high %v1501, %v1501
    %v1510 = vcombine.high %v1508, %v1508
    %v1512 = vunpack.c.l.s4 1966171168
    %v1513 = vunpack.c.0.s8 %v1512
    %v1514 = vlaneseq
    %v1515 = vshrl.u32 %v1514, 7
    %v1516 = vsub.s32 %v1513, %v1515
    %v1517 = vrot.slane %v1501, %v1516
    %v1519 = vunpack.c.l.s4 1966171168
    %v1520 = vunpack.c.0.s8 %v1519
    %v1521 = vlaneseq
    %v1522 = vshrl.u32 %v1521, 7
    %v1523 = vsub.s32 %v1520, %v1522
    %v1524 = vrot.slane %v1508, %v1523
    %v1526 = vunpack.c.l.s4 1966171168
    %v1527 = vunpack.c.0.s8 %v1526
    %v1528 = vlaneseq
    %v1529 = vshrl.u32 %v1528, 7
    %v1530 = vsub.s32 %v1527, %v1529
    %v1531 = vrot.slane %v1509, %v1530
    %v1533 = vunpack.c.l.s4 1966171168
    %v1534 = vunpack.c.0.s8 %v1533
    %v1535 = vlaneseq
    %v1536 = vshrl.u32 %v1535, 7
    %v1537 = vsub.s32 %v1534, %v1536
    %v1538 = vrot.slane %v1510, %v1537
    %v1539 = vcombine.high %v1517, %v1517
    %v1540 = vcombine.high %v1531, %v1531
    %1547 = vmatprep.subr.bf16.mxu0 0
    %1548 = vmatpush1.bf16.msra.mxu0 %v921
    %1549 = vmatprep.subr.bf16.mxu0 0
    %1550 = vmatpush1.bf16.msra.mxu0 %v922
    %1551 = vmatprep.subr.bf16.mxu0 0
    %1552 = vmatpush1.bf16.msra.mxu0 %v923
    %1553 = vmatprep.subr.bf16.mxu0 0
    %1554 = vmatpush1.bf16.msra.mxu0 %v924
    %1555 = vmatprep.subr.bf16.mxu0 0
    %1556 = vmatpush1.bf16.msra.mxu0 %v925
    %1557 = vmatprep.subr.bf16.mxu0 0
    %1558 = vmatpush1.bf16.msra.mxu0 %v926
    %1559 = vmatprep.subr.bf16.mxu0 0
    %1560 = vmatpush1.bf16.msra.mxu0 %v927
    %1561 = vmatprep.subr.bf16.mxu0 0
    %1562 = vmatpush1.bf16.msra.mxu0 %v928
    %1563 = vmatprep.subr.bf16.mxu0 0
    %1564 = vmatpush1.bf16.msra.mxu0 %v929
    %1565 = vmatprep.subr.bf16.mxu0 0
    %1566 = vmatpush1.bf16.msra.mxu0 %v930
    %1567 = vmatprep.subr.bf16.mxu0 0
    %1568 = vmatpush1.bf16.msra.mxu0 %v931
    %1569 = vmatprep.subr.bf16.mxu0 0
    %1570 = vmatpush1.bf16.msra.mxu0 %v932
    %1571 = vmatprep.subr.bf16.mxu0 0
    %1572 = vmatpush1.bf16.msra.mxu0 %v933
    %1573 = vmatprep.subr.bf16.mxu0 0
    %1574 = vmatpush1.bf16.msra.mxu0 %v934
    %1575 = vmatprep.subr.bf16.mxu0 0
    %1576 = vmatpush1.bf16.msra.mxu0 %v935
    %1577 = vmatprep.subr.bf16.mxu0 0
    %1578 = vmatpush1.bf16.msra.mxu0 %v936
    %1579 = vmatprep.mubr.bf16.mxu0 %v1531
    %1580 = vmatmul.mubr.bf16.gmra.mrb[0].mxu0 %v1517
    %v1581 = vpop.f32.mrb[0].mxu0
    %v1582 = vadd.f32 0.0, %v1581
    %v1583 = vpop.f32.mrb[0].mxu0
    %v1584 = vpop.f32.mrb[0].mxu0
    %v1585 = vpop.f32.mrb[0].mxu0
    %1586 = vdwg.mxu0
    %1587 = vmatprep.subr.bf16.mxu0 0
    %1588 = vmatpush1.bf16.msra.mxu0 %v937
    %1589 = vmatprep.subr.bf16.mxu0 0
    %1590 = vmatpush1.bf16.msra.mxu0 %v938
    %1591 = vmatprep.subr.bf16.mxu0 0
    %1592 = vmatpush1.bf16.msra.mxu0 %v939
    %1593 = vmatprep.subr.bf16.mxu0 0
    %1594 = vmatpush1.bf16.msra.mxu0 %v940
    %1595 = vmatprep.subr.bf16.mxu0 0
    %1596 = vmatpush1.bf16.msra.mxu0 %v941
    %1597 = vmatprep.subr.bf16.mxu0 0
    %1598 = vmatpush1.bf16.msra.mxu0 %v942
    %1599 = vmatprep.subr.bf16.mxu0 0
    %1600 = vmatpush1.bf16.msra.mxu0 %v943
    %1601 = vmatprep.subr.bf16.mxu0 0
    %1602 = vmatpush1.bf16.msra.mxu0 %v944
    %1603 = vmatprep.subr.bf16.mxu0 0
    %1604 = vmatpush1.bf16.msra.mxu0 %v945
    %1605 = vmatprep.subr.bf16.mxu0 0
    %1606 = vmatpush1.bf16.msra.mxu0 %v946
    %1607 = vmatprep.subr.bf16.mxu0 0
    %1608 = vmatpush1.bf16.msra.mxu0 %v947
    %1609 = vmatprep.subr.bf16.mxu0 0
    %1610 = vmatpush1.bf16.msra.mxu0 %v948
    %1611 = vmatprep.subr.bf16.mxu0 0
    %1612 = vmatpush1.bf16.msra.mxu0 %v949
    %1613 = vmatprep.subr.bf16.mxu0 0
    %1614 = vmatpush1.bf16.msra.mxu0 %v950
    %1615 = vmatprep.subr.bf16.mxu0 0
    %1616 = vmatpush1.bf16.msra.mxu0 %v951
    %1617 = vmatprep.subr.bf16.mxu0 0
    %1618 = vmatpush1.bf16.msra.mxu0 %v952
    %1619 = vmatprep.mubr.bf16.mxu0 %v1540
    %1620 = vmatmul.mubr.bf16.gmra.mrb[0].mxu0 %v1539
    %v1621 = vpop.f32.mrb[0].mxu0
    %v1622 = vadd.f32 %v1582, %v1621
    %v1623 = vpop.f32.mrb[0].mxu0
    %v1624 = vpop.f32.mrb[0].mxu0
    %v1625 = vpop.f32.mrb[0].mxu0
    %1626 = vdwg.mxu0
    %1627 = vmatprep.subr.bf16.mxu0 0
    %1628 = vmatpush1.bf16.msra.mxu0 %v953
    %1629 = vmatprep.subr.bf16.mxu0 0
    %1630 = vmatpush1.bf16.msra.mxu0 %v954
    %1631 = vmatprep.subr.bf16.mxu0 0
    %1632 = vmatpush1.bf16.msra.mxu0 %v955
    %1633 = vmatprep.subr.bf16.mxu0 0
    %1634 = vmatpush1.bf16.msra.mxu0 %v956
    %1635 = vmatprep.subr.bf16.mxu0 0
    %1636 = vmatpush1.bf16.msra.mxu0 %v957
    %1637 = vmatprep.subr.bf16.mxu0 0
    %1638 = vmatpush1.bf16.msra.mxu0 %v958
    %1639 = vmatprep.subr.bf16.mxu0 0
    %1640 = vmatpush1.bf16.msra.mxu0 %v959
    %1641 = vmatprep.subr.bf16.mxu0 0
    %1642 = vmatpush1.bf16.msra.mxu0 %v960
    %1643 = vmatprep.subr.bf16.mxu0 0
    %1644 = vmatpush1.bf16.msra.mxu0 %v961
    %1645 = vmatprep.subr.bf16.mxu0 0
    %1646 = vmatpush1.bf16.msra.mxu0 %v962
    %1647 = vmatprep.subr.bf16.mxu0 0
    %1648 = vmatpush1.bf16.msra.mxu0 %v963
    %1649 = vmatprep.subr.bf16.mxu0 0
    %1650 = vmatpush1.bf16.msra.mxu0 %v964
    %1651 = vmatprep.subr.bf16.mxu0 0
    %1652 = vmatpush1.bf16.msra.mxu0 %v965
    %1653 = vmatprep.subr.bf16.mxu0 0
    %1654 = vmatpush1.bf16.msra.mxu0 %v966
    %1655 = vmatprep.subr.bf16.mxu0 0
    %1656 = vmatpush1.bf16.msra.mxu0 %v967
    %1657 = vmatprep.subr.bf16.mxu0 0
    %1658 = vmatpush1.bf16.msra.mxu0 %v968
    %1659 = vmatprep.mubr.bf16.mxu0 %v1538
    %1660 = vmatmul.mubr.bf16.gmra.mrb[0].mxu0 %v1524
    %v1661 = vpop.f32.mrb[0].mxu0
    %v1662 = vadd.f32 %v1622, %v1661
    %v1663 = vpop.f32.mrb[0].mxu0
    %v1664 = vpop.f32.mrb[0].mxu0
    %v1665 = vpop.f32.mrb[0].mxu0
    %1666 = vdwg.mxu0
    %v1667 = vadd.f32 %v1490, %v1662
    %s1668 = scalar_lea.vmem %s1, 12
    %v1669 = vld [vmem:[%s1668] sm:$0x3f]
    %v1671 = vcombine.high %v1669, %v1669
    %v1673 = vunpack.c.l.s4 1966171168
    %v1674 = vunpack.c.0.s8 %v1673
    %v1675 = vlaneseq
    %v1676 = vshrl.u32 %v1675, 7
    %v1677 = vsub.s32 %v1674, %v1676
    %v1678 = vrot.slane %v1669, %v1677
    %v1680 = vunpack.c.l.s4 1966171168
    %v1681 = vunpack.c.0.s8 %v1680
    %v1682 = vlaneseq
    %v1683 = vshrl.u32 %v1682, 7
    %v1684 = vsub.s32 %v1681, %v1683
    %v1685 = vrot.slane %v1671, %v1684
    %v1686 = vcombine.high %v1678, %v1678
    %v1687 = vcombine.high %v1685, %v1685
    %v1689 = vunpack.c.l.s4 1966171168
    %v1690 = vunpack.c.0.s8 %v1689
    %v1691 = vlaneseq
    %v1692 = vshrl.u32 %v1691, 7
    %v1693 = vsub.s32 %v1690, %v1692
    %v1694 = vrot.slane %v1678, %v1693
    %v1696 = vunpack.c.l.s4 1966171168
    %v1697 = vunpack.c.0.s8 %v1696
    %v1698 = vlaneseq
    %v1699 = vshrl.u32 %v1698, 7
    %v1700 = vsub.s32 %v1697, %v1699
    %v1701 = vrot.slane %v1685, %v1700
    %v1703 = vunpack.c.l.s4 1966171168
    %v1704 = vunpack.c.0.s8 %v1703
    %v1705 = vlaneseq
    %v1706 = vshrl.u32 %v1705, 7
    %v1707 = vsub.s32 %v1704, %v1706
    %v1708 = vrot.slane %v1686, %v1707
    %v1710 = vunpack.c.l.s4 1966171168
    %v1711 = vunpack.c.0.s8 %v1710
    %v1712 = vlaneseq
    %v1713 = vshrl.u32 %v1712, 7
    %v1714 = vsub.s32 %v1711, %v1713
    %v1715 = vrot.slane %v1687, %v1714
    %v1716 = vcombine.high %v1694, %v1694
    %v1717 = vcombine.high %v1708, %v1708
    %1724 = vmatprep.subr.bf16.mxu0 0
    %1725 = vmatpush1.bf16.msra.mxu0 %v459
    %1726 = vmatprep.subr.bf16.mxu0 0
    %1727 = vmatpush1.bf16.msra.mxu0 %v460
    %1728 = vmatprep.subr.bf16.mxu0 0
    %1729 = vmatpush1.bf16.msra.mxu0 %v461
    %1730 = vmatprep.subr.bf16.mxu0 0
    %1731 = vmatpush1.bf16.msra.mxu0 %v462
    %1732 = vmatprep.subr.bf16.mxu0 0
    %1733 = vmatpush1.bf16.msra.mxu0 %v463
    %1734 = vmatprep.subr.bf16.mxu0 0
    %1735 = vmatpush1.bf16.msra.mxu0 %v464
    %1736 = vmatprep.subr.bf16.mxu0 0
    %1737 = vmatpush1.bf16.msra.mxu0 %v465
    %1738 = vmatprep.subr.bf16.mxu0 0
    %1739 = vmatpush1.bf16.msra.mxu0 %v466
    %1740 = vmatprep.subr.bf16.mxu0 0
    %1741 = vmatpush1.bf16.msra.mxu0 %v467
    %1742 = vmatprep.subr.bf16.mxu0 0
    %1743 = vmatpush1.bf16.msra.mxu0 %v468
    %1744 = vmatprep.subr.bf16.mxu0 0
    %1745 = vmatpush1.bf16.msra.mxu0 %v469
    %1746 = vmatprep.subr.bf16.mxu0 0
    %1747 = vmatpush1.bf16.msra.mxu0 %v470
    %1748 = vmatprep.subr.bf16.mxu0 0
    %1749 = vmatpush1.bf16.msra.mxu0 %v471
    %1750 = vmatprep.subr.bf16.mxu0 0
    %1751 = vmatpush1.bf16.msra.mxu0 %v472
    %1752 = vmatprep.subr.bf16.mxu0 0
    %1753 = vmatpush1.bf16.msra.mxu0 %v473
    %1754 = vmatprep.subr.bf16.mxu0 0
    %1755 = vmatpush1.bf16.msra.mxu0 %v474
    %1756 = vmatprep.mubr.bf16.mxu0 %v1708
    %1757 = vmatmul.mubr.bf16.gmra.mrb[0].mxu0 %v1694
    %v1758 = vpop.f32.mrb[0].mxu0
    %v1759 = vadd.f32 0.0, %v1758
    %v1760 = vpop.f32.mrb[0].mxu0
    %v1761 = vpop.f32.mrb[0].mxu0
    %v1762 = vpop.f32.mrb[0].mxu0
    %1763 = vdwg.mxu0
    %1764 = vmatprep.subr.bf16.mxu0 0
    %1765 = vmatpush1.bf16.msra.mxu0 %v475
    %1766 = vmatprep.subr.bf16.mxu0 0
    %1767 = vmatpush1.bf16.msra.mxu0 %v476
    %1768 = vmatprep.subr.bf16.mxu0 0
    %1769 = vmatpush1.bf16.msra.mxu0 %v477
    %1770 = vmatprep.subr.bf16.mxu0 0
    %1771 = vmatpush1.bf16.msra.mxu0 %v478
    %1772 = vmatprep.subr.bf16.mxu0 0
    %1773 = vmatpush1.bf16.msra.mxu0 %v479
    %1774 = vmatprep.subr.bf16.mxu0 0
    %1775 = vmatpush1.bf16.msra.mxu0 %v480
    %1776 = vmatprep.subr.bf16.mxu0 0
    %1777 = vmatpush1.bf16.msra.mxu0 %v481
    %1778 = vmatprep.subr.bf16.mxu0 0
    %1779 = vmatpush1.bf16.msra.mxu0 %v482
    %1780 = vmatprep.subr.bf16.mxu0 0
    %1781 = vmatpush1.bf16.msra.mxu0 %v483
    %1782 = vmatprep.subr.bf16.mxu0 0
    %1783 = vmatpush1.bf16.msra.mxu0 %v484
    %1784 = vmatprep.subr.bf16.mxu0 0
    %1785 = vmatpush1.bf16.msra.mxu0 %v485
    %1786 = vmatprep.subr.bf16.mxu0 0
    %1787 = vmatpush1.bf16.msra.mxu0 %v486
    %1788 = vmatprep.subr.bf16.mxu0 0
    %1789 = vmatpush1.bf16.msra.mxu0 %v487
    %1790 = vmatprep.subr.bf16.mxu0 0
    %1791 = vmatpush1.bf16.msra.mxu0 %v488
    %1792 = vmatprep.subr.bf16.mxu0 0
    %1793 = vmatpush1.bf16.msra.mxu0 %v489
    %1794 = vmatprep.subr.bf16.mxu0 0
    %1795 = vmatpush1.bf16.msra.mxu0 %v490
    %1796 = vmatprep.mubr.bf16.mxu0 %v1717
    %1797 = vmatmul.mubr.bf16.gmra.mrb[0].mxu0 %v1716
    %v1798 = vpop.f32.mrb[0].mxu0
    %v1799 = vadd.f32 %v1759, %v1798
    %v1800 = vpop.f32.mrb[0].mxu0
    %v1801 = vpop.f32.mrb[0].mxu0
    %v1802 = vpop.f32.mrb[0].mxu0
    %1803 = vdwg.mxu0
    %1804 = vmatprep.subr.bf16.mxu0 0
    %1805 = vmatpush1.bf16.msra.mxu0 %v491
    %1806 = vmatprep.subr.bf16.mxu0 0
    %1807 = vmatpush1.bf16.msra.mxu0 %v492
    %1808 = vmatprep.subr.bf16.mxu0 0
    %1809 = vmatpush1.bf16.msra.mxu0 %v493
    %1810 = vmatprep.subr.bf16.mxu0 0
    %1811 = vmatpush1.bf16.msra.mxu0 %v494
    %1812 = vmatprep.subr.bf16.mxu0 0
    %1813 = vmatpush1.bf16.msra.mxu0 %v495
    %1814 = vmatprep.subr.bf16.mxu0 0
    %1815 = vmatpush1.bf16.msra.mxu0 %v496
    %1816 = vmatprep.subr.bf16.mxu0 0
    %1817 = vmatpush1.bf16.msra.mxu0 %v497
    %1818 = vmatprep.subr.bf16.mxu0 0
    %1819 = vmatpush1.bf16.msra.mxu0 %v498
    %1820 = vmatprep.subr.bf16.mxu0 0
    %1821 = vmatpush1.bf16.msra.mxu0 %v499
    %1822 = vmatprep.subr.bf16.mxu0 0
    %1823 = vmatpush1.bf16.msra.mxu0 %v500
    %1824 = vmatprep.subr.bf16.mxu0 0
    %1825 = vmatpush1.bf16.msra.mxu0 %v501
    %1826 = vmatprep.subr.bf16.mxu0 0
    %1827 = vmatpush1.bf16.msra.mxu0 %v502
    %1828 = vmatprep.subr.bf16.mxu0 0
    %1829 = vmatpush1.bf16.msra.mxu0 %v503
    %1830 = vmatprep.subr.bf16.mxu0 0
    %1831 = vmatpush1.bf16.msra.mxu0 %v504
    %1832 = vmatprep.subr.bf16.mxu0 0
    %1833 = vmatpush1.bf16.msra.mxu0 %v505
    %1834 = vmatprep.subr.bf16.mxu0 0
    %1835 = vmatpush1.bf16.msra.mxu0 %v506
    %1836 = vmatprep.mubr.bf16.mxu0 %v1715
    %1837 = vmatmul.mubr.bf16.gmra.mrb[0].mxu0 %v1701
    %v1838 = vpop.f32.mrb[0].mxu0
    %v1839 = vadd.f32 %v1799, %v1838
    %v1840 = vpop.f32.mrb[0].mxu0
    %v1841 = vpop.f32.mrb[0].mxu0
    %v1842 = vpop.f32.mrb[0].mxu0
    %1843 = vdwg.mxu0
    %v1844 = vadd.f32 %v1667, %v1839
    %s1845 = scalar_lea.vmem %s0, 18
    %v1846 = vld [vmem:[%s1845] sm:$0x3f]
    %v1848 = vcombine.high %v1846, %v1846
    %v1850 = vunpack.c.l.s4 1966171168
    %v1851 = vunpack.c.0.s8 %v1850
    %v1852 = vlaneseq
    %v1853 = vshrl.u32 %v1852, 7
    %v1854 = vsub.s32 %v1851, %v1853
    %v1855 = vrot.slane %v1846, %v1854
    %v1857 = vunpack.c.l.s4 1966171168
    %v1858 = vunpack.c.0.s8 %v1857
    %v1859 = vlaneseq
    %v1860 = vshrl.u32 %v1859, 7
    %v1861 = vsub.s32 %v1858, %v1860
    %v1862 = vrot.slane %v1848, %v1861
    %v1863 = vcombine.high %v1855, %v1855
    %v1864 = vcombine.high %v1862, %v1862
    %v1866 = vunpack.c.l.s4 1966171168
    %v1867 = vunpack.c.0.s8 %v1866
    %v1868 = vlaneseq
    %v1869 = vshrl.u32 %v1868, 7
    %v1870 = vsub.s32 %v1867, %v1869
    %v1871 = vrot.slane %v1855, %v1870
    %v1873 = vunpack.c.l.s4 1966171168
    %v1874 = vunpack.c.0.s8 %v1873
    %v1875 = vlaneseq
    %v1876 = vshrl.u32 %v1875, 7
    %v1877 = vsub.s32 %v1874, %v1876
    %v1878 = vrot.slane %v1862, %v1877
    %v1880 = vunpack.c.l.s4 1966171168
    %v1881 = vunpack.c.0.s8 %v1880
    %v1882 = vlaneseq
    %v1883 = vshrl.u32 %v1882, 7
    %v1884 = vsub.s32 %v1881, %v1883
    %v1885 = vrot.slane %v1863, %v1884
    %v1887 = vunpack.c.l.s4 1966171168
    %v1888 = vunpack.c.0.s8 %v1887
    %v1889 = vlaneseq
    %v1890 = vshrl.u32 %v1889, 7
    %v1891 = vsub.s32 %v1888, %v1890
    %v1892 = vrot.slane %v1864, %v1891
    %v1893 = vcombine.high %v1871, %v1871
    %v1894 = vcombine.high %v1885, %v1885
    %1901 = vmatprep.subr.bf16.mxu0 0
    %1902 = vmatpush1.bf16.msra.mxu0 %v921
    %1903 = vmatprep.subr.bf16.mxu0 0
    %1904 = vmatpush1.bf16.msra.mxu0 %v922
    %1905 = vmatprep.subr.bf16.mxu0 0
    %1906 = vmatpush1.bf16.msra.mxu0 %v923
    %1907 = vmatprep.subr.bf16.mxu0 0
    %1908 = vmatpush1.bf16.msra.mxu0 %v924
    %1909 = vmatprep.subr.bf16.mxu0 0
    %1910 = vmatpush1.bf16.msra.mxu0 %v925
    %1911 = vmatprep.subr.bf16.mxu0 0
    %1912 = vmatpush1.bf16.msra.mxu0 %v926
    %1913 = vmatprep.subr.bf16.mxu0 0
    %1914 = vmatpush1.bf16.msra.mxu0 %v927
    %1915 = vmatprep.subr.bf16.mxu0 0
    %1916 = vmatpush1.bf16.msra.mxu0 %v928
    %1917 = vmatprep.subr.bf16.mxu0 0
    %1918 = vmatpush1.bf16.msra.mxu0 %v929
    %1919 = vmatprep.subr.bf16.mxu0 0
    %1920 = vmatpush1.bf16.msra.mxu0 %v930
    %1921 = vmatprep.subr.bf16.mxu0 0
    %1922 = vmatpush1.bf16.msra.mxu0 %v931
    %1923 = vmatprep.subr.bf16.mxu0 0
    %1924 = vmatpush1.bf16.msra.mxu0 %v932
    %1925 = vmatprep.subr.bf16.mxu0 0
    %1926 = vmatpush1.bf16.msra.mxu0 %v933
    %1927 = vmatprep.subr.bf16.mxu0 0
    %1928 = vmatpush1.bf16.msra.mxu0 %v934
    %1929 = vmatprep.subr.bf16.mxu0 0
    %1930 = vmatpush1.bf16.msra.mxu0 %v935
    %1931 = vmatprep.subr.bf16.mxu0 0
    %1932 = vmatpush1.bf16.msra.mxu0 %v936
    %1933 = vmatprep.mubr.bf16.mxu0 %v1885
    %1934 = vmatmul.mubr.bf16.gmra.mrb[0].mxu0 %v1871
    %v1935 = vpop.f32.mrb[0].mxu0
    %v1936 = vadd.f32 0.0, %v1935
    %v1937 = vpop.f32.mrb[0].mxu0
    %v1938 = vpop.f32.mrb[0].mxu0
    %v1939 = vpop.f32.mrb[0].mxu0
    %1940 = vdwg.mxu0
    %1941 = vmatprep.subr.bf16.mxu0 0
    %1942 = vmatpush1.bf16.msra.mxu0 %v937
    %1943 = vmatprep.subr.bf16.mxu0 0
    %1944 = vmatpush1.bf16.msra.mxu0 %v938
    %1945 = vmatprep.subr.bf16.mxu0 0
    %1946 = vmatpush1.bf16.msra.mxu0 %v939
    %1947 = vmatprep.subr.bf16.mxu0 0
    %1948 = vmatpush1.bf16.msra.mxu0 %v940
    %1949 = vmatprep.subr.bf16.mxu0 0
    %1950 = vmatpush1.bf16.msra.mxu0 %v941
    %1951 = vmatprep.subr.bf16.mxu0 0
    %1952 = vmatpush1.bf16.msra.mxu0 %v942
    %1953 = vmatprep.subr.bf16.mxu0 0
    %1954 = vmatpush1.bf16.msra.mxu0 %v943
    %1955 = vmatprep.subr.bf16.mxu0 0
    %1956 = vmatpush1.bf16.msra.mxu0 %v944
    %1957 = vmatprep.subr.bf16.mxu0 0
    %1958 = vmatpush1.bf16.msra.mxu0 %v945
    %1959 = vmatprep.subr.bf16.mxu0 0
    %1960 = vmatpush1.bf16.msra.mxu0 %v946
    %1961 = vmatprep.subr.bf16.mxu0 0
    %1962 = vmatpush1.bf16.msra.mxu0 %v947
    %1963 = vmatprep.subr.bf16.mxu0 0
    %1964 = vmatpush1.bf16.msra.mxu0 %v948
    %1965 = vmatprep.subr.bf16.mxu0 0
    %1966 = vmatpush1.bf16.msra.mxu0 %v949
    %1967 = vmatprep.subr.bf16.mxu0 0
    %1968 = vmatpush1.bf16.msra.mxu0 %v950
    %1969 = vmatprep.subr.bf16.mxu0 0
    %1970 = vmatpush1.bf16.msra.mxu0 %v951
    %1971 = vmatprep.subr.bf16.mxu0 0
    %1972 = vmatpush1.bf16.msra.mxu0 %v952
    %1973 = vmatprep.mubr.bf16.mxu0 %v1894
    %1974 = vmatmul.mubr.bf16.gmra.mrb[0].mxu0 %v1893
    %v1975 = vpop.f32.mrb[0].mxu0
    %v1976 = vadd.f32 %v1936, %v1975
    %v1977 = vpop.f32.mrb[0].mxu0
    %v1978 = vpop.f32.mrb[0].mxu0
    %v1979 = vpop.f32.mrb[0].mxu0
    %1980 = vdwg.mxu0
    %1981 = vmatprep.subr.bf16.mxu0 0
    %1982 = vmatpush1.bf16.msra.mxu0 %v953
    %1983 = vmatprep.subr.bf16.mxu0 0
    %1984 = vmatpush1.bf16.msra.mxu0 %v954
    %1985 = vmatprep.subr.bf16.mxu0 0
    %1986 = vmatpush1.bf16.msra.mxu0 %v955
    %1987 = vmatprep.subr.bf16.mxu0 0
    %1988 = vmatpush1.bf16.msra.mxu0 %v956
    %1989 = vmatprep.subr.bf16.mxu0 0
    %1990 = vmatpush1.bf16.msra.mxu0 %v957
    %1991 = vmatprep.subr.bf16.mxu0 0
    %1992 = vmatpush1.bf16.msra.mxu0 %v958
    %1993 = vmatprep.subr.bf16.mxu0 0
    %1994 = vmatpush1.bf16.msra.mxu0 %v959
    %1995 = vmatprep.subr.bf16.mxu0 0
    %1996 = vmatpush1.bf16.msra.mxu0 %v960
    %1997 = vmatprep.subr.bf16.mxu0 0
    %1998 = vmatpush1.bf16.msra.mxu0 %v961
    %1999 = vmatprep.subr.bf16.mxu0 0
    %2000 = vmatpush1.bf16.msra.mxu0 %v962
    %2001 = vmatprep.subr.bf16.mxu0 0
    %2002 = vmatpush1.bf16.msra.mxu0 %v963
    %2003 = vmatprep.subr.bf16.mxu0 0
    %2004 = vmatpush1.bf16.msra.mxu0 %v964
    %2005 = vmatprep.subr.bf16.mxu0 0
    %2006 = vmatpush1.bf16.msra.mxu0 %v965
    %2007 = vmatprep.subr.bf16.mxu0 0
    %2008 = vmatpush1.bf16.msra.mxu0 %v966
    %2009 = vmatprep.subr.bf16.mxu0 0
    %2010 = vmatpush1.bf16.msra.mxu0 %v967
    %2011 = vmatprep.subr.bf16.mxu0 0
    %2012 = vmatpush1.bf16.msra.mxu0 %v968
    %2013 = vmatprep.mubr.bf16.mxu0 %v1892
    %2014 = vmatmul.mubr.bf16.gmra.mrb[0].mxu0 %v1878
    %v2015 = vpop.f32.mrb[0].mxu0
    %v2016 = vadd.f32 %v1976, %v2015
    %v2017 = vpop.f32.mrb[0].mxu0
    %v2018 = vpop.f32.mrb[0].mxu0
    %v2019 = vpop.f32.mrb[0].mxu0
    %2020 = vdwg.mxu0
    %v2021 = vadd.f32 %v1844, %v2016
    %s2022 = scalar_lea.vmem %s1, 18
    %v2023 = vld [vmem:[%s2022] sm:$0x3f]
    %v2025 = vcombine.high %v2023, %v2023
    %v2027 = vunpack.c.l.s4 1966171168
    %v2028 = vunpack.c.0.s8 %v2027
    %v2029 = vlaneseq
    %v2030 = vshrl.u32 %v2029, 7
    %v2031 = vsub.s32 %v2028, %v2030
    %v2032 = vrot.slane %v2023, %v2031
    %v2034 = vunpack.c.l.s4 1966171168
    %v2035 = vunpack.c.0.s8 %v2034
    %v2036 = vlaneseq
    %v2037 = vshrl.u32 %v2036, 7
    %v2038 = vsub.s32 %v2035, %v2037
    %v2039 = vrot.slane %v2025, %v2038
    %v2040 = vcombine.high %v2032, %v2032
    %v2041 = vcombine.high %v2039, %v2039
    %v2043 = vunpack.c.l.s4 1966171168
    %v2044 = vunpack.c.0.s8 %v2043
    %v2045 = vlaneseq
    %v2046 = vshrl.u32 %v2045, 7
    %v2047 = vsub.s32 %v2044, %v2046
    %v2048 = vrot.slane %v2032, %v2047
    %v2050 = vunpack.c.l.s4 1966171168
    %v2051 = vunpack.c.0.s8 %v2050
    %v2052 = vlaneseq
    %v2053 = vshrl.u32 %v2052, 7
    %v2054 = vsub.s32 %v2051, %v2053
    %v2055 = vrot.slane %v2039, %v2054
    %v2057 = vunpack.c.l.s4 1966171168
    %v2058 = vunpack.c.0.s8 %v2057
    %v2059 = vlaneseq
    %v2060 = vshrl.u32 %v2059, 7
    %v2061 = vsub.s32 %v2058, %v2060
    %v2062 = vrot.slane %v2040, %v2061
    %v2064 = vunpack.c.l.s4 1966171168
    %v2065 = vunpack.c.0.s8 %v2064
    %v2066 = vlaneseq
    %v2067 = vshrl.u32 %v2066, 7
    %v2068 = vsub.s32 %v2065, %v2067
    %v2069 = vrot.slane %v2041, %v2068
    %v2070 = vcombine.high %v2048, %v2048
    %v2071 = vcombine.high %v2062, %v2062
    %2078 = vmatprep.subr.bf16.mxu0 0
    %2079 = vmatpush1.bf16.msra.mxu0 %v459
    %2080 = vmatprep.subr.bf16.mxu0 0
    %2081 = vmatpush1.bf16.msra.mxu0 %v460
    %2082 = vmatprep.subr.bf16.mxu0 0
    %2083 = vmatpush1.bf16.msra.mxu0 %v461
    %2084 = vmatprep.subr.bf16.mxu0 0
    %2085 = vmatpush1.bf16.msra.mxu0 %v462
    %2086 = vmatprep.subr.bf16.mxu0 0
    %2087 = vmatpush1.bf16.msra.mxu0 %v463
    %2088 = vmatprep.subr.bf16.mxu0 0
    %2089 = vmatpush1.bf16.msra.mxu0 %v464
    %2090 = vmatprep.subr.bf16.mxu0 0
    %2091 = vmatpush1.bf16.msra.mxu0 %v465
    %2092 = vmatprep.subr.bf16.mxu0 0
    %2093 = vmatpush1.bf16.msra.mxu0 %v466
    %2094 = vmatprep.subr.bf16.mxu0 0
    %2095 = vmatpush1.bf16.msra.mxu0 %v467
    %2096 = vmatprep.subr.bf16.mxu0 0
    %2097 = vmatpush1.bf16.msra.mxu0 %v468
    %2098 = vmatprep.subr.bf16.mxu0 0
    %2099 = vmatpush1.bf16.msra.mxu0 %v469
    %2100 = vmatprep.subr.bf16.mxu0 0
    %2101 = vmatpush1.bf16.msra.mxu0 %v470
    %2102 = vmatprep.subr.bf16.mxu0 0
    %2103 = vmatpush1.bf16.msra.mxu0 %v471
    %2104 = vmatprep.subr.bf16.mxu0 0
    %2105 = vmatpush1.bf16.msra.mxu0 %v472
    %2106 = vmatprep.subr.bf16.mxu0 0
    %2107 = vmatpush1.bf16.msra.mxu0 %v473
    %2108 = vmatprep.subr.bf16.mxu0 0
    %2109 = vmatpush1.bf16.msra.mxu0 %v474
    %2110 = vmatprep.mubr.bf16.mxu0 %v2062
    %2111 = vmatmul.mubr.bf16.gmra.mrb[0].mxu0 %v2048
    %v2112 = vpop.f32.mrb[0].mxu0
    %v2113 = vadd.f32 0.0, %v2112
    %v2114 = vpop.f32.mrb[0].mxu0
    %v2115 = vpop.f32.mrb[0].mxu0
    %v2116 = vpop.f32.mrb[0].mxu0
    %2117 = vdwg.mxu0
    %2118 = vmatprep.subr.bf16.mxu0 0
    %2119 = vmatpush1.bf16.msra.mxu0 %v475
    %2120 = vmatprep.subr.bf16.mxu0 0
    %2121 = vmatpush1.bf16.msra.mxu0 %v476
    %2122 = vmatprep.subr.bf16.mxu0 0
    %2123 = vmatpush1.bf16.msra.mxu0 %v477
    %2124 = vmatprep.subr.bf16.mxu0 0
    %2125 = vmatpush1.bf16.msra.mxu0 %v478
    %2126 = vmatprep.subr.bf16.mxu0 0
    %2127 = vmatpush1.bf16.msra.mxu0 %v479
    %2128 = vmatprep.subr.bf16.mxu0 0
    %2129 = vmatpush1.bf16.msra.mxu0 %v480
    %2130 = vmatprep.subr.bf16.mxu0 0
    %2131 = vmatpush1.bf16.msra.mxu0 %v481
    %2132 = vmatprep.subr.bf16.mxu0 0
    %2133 = vmatpush1.bf16.msra.mxu0 %v482
    %2134 = vmatprep.subr.bf16.mxu0 0
    %2135 = vmatpush1.bf16.msra.mxu0 %v483
    %2136 = vmatprep.subr.bf16.mxu0 0
    %2137 = vmatpush1.bf16.msra.mxu0 %v484
    %2138 = vmatprep.subr.bf16.mxu0 0
    %2139 = vmatpush1.bf16.msra.mxu0 %v485
    %2140 = vmatprep.subr.bf16.mxu0 0
    %2141 = vmatpush1.bf16.msra.mxu0 %v486
    %2142 = vmatprep.subr.bf16.mxu0 0
    %2143 = vmatpush1.bf16.msra.mxu0 %v487
    %2144 = vmatprep.subr.bf16.mxu0 0
    %2145 = vmatpush1.bf16.msra.mxu0 %v488
    %2146 = vmatprep.subr.bf16.mxu0 0
    %2147 = vmatpush1.bf16.msra.mxu0 %v489
    %2148 = vmatprep.subr.bf16.mxu0 0
    %2149 = vmatpush1.bf16.msra.mxu0 %v490
    %2150 = vmatprep.mubr.bf16.mxu0 %v2071
    %2151 = vmatmul.mubr.bf16.gmra.mrb[0].mxu0 %v2070
    %v2152 = vpop.f32.mrb[0].mxu0
    %v2153 = vadd.f32 %v2113, %v2152
    %v2154 = vpop.f32.mrb[0].mxu0
    %v2155 = vpop.f32.mrb[0].mxu0
    %v2156 = vpop.f32.mrb[0].mxu0
    %2157 = vdwg.mxu0
    %2158 = vmatprep.subr.bf16.mxu0 0
    %2159 = vmatpush1.bf16.msra.mxu0 %v491
    %2160 = vmatprep.subr.bf16.mxu0 0
    %2161 = vmatpush1.bf16.msra.mxu0 %v492
    %2162 = vmatprep.subr.bf16.mxu0 0
    %2163 = vmatpush1.bf16.msra.mxu0 %v493
    %2164 = vmatprep.subr.bf16.mxu0 0
    %2165 = vmatpush1.bf16.msra.mxu0 %v494
    %2166 = vmatprep.subr.bf16.mxu0 0
    %2167 = vmatpush1.bf16.msra.mxu0 %v495
    %2168 = vmatprep.subr.bf16.mxu0 0
    %2169 = vmatpush1.bf16.msra.mxu0 %v496
    %2170 = vmatprep.subr.bf16.mxu0 0
    %2171 = vmatpush1.bf16.msra.mxu0 %v497
    %2172 = vmatprep.subr.bf16.mxu0 0
    %2173 = vmatpush1.bf16.msra.mxu0 %v498
    %2174 = vmatprep.subr.bf16.mxu0 0
    %2175 = vmatpush1.bf16.msra.mxu0 %v499
    %2176 = vmatprep.subr.bf16.mxu0 0
    %2177 = vmatpush1.bf16.msra.mxu0 %v500
    %2178 = vmatprep.subr.bf16.mxu0 0
    %2179 = vmatpush1.bf16.msra.mxu0 %v501
    %2180 = vmatprep.subr.bf16.mxu0 0
    %2181 = vmatpush1.bf16.msra.mxu0 %v502
    %2182 = vmatprep.subr.bf16.mxu0 0
    %2183 = vmatpush1.bf16.msra.mxu0 %v503
    %2184 = vmatprep.subr.bf16.mxu0 0
    %2185 = vmatpush1.bf16.msra.mxu0 %v504
    %2186 = vmatprep.subr.bf16.mxu0 0
    %2187 = vmatpush1.bf16.msra.mxu0 %v505
    %2188 = vmatprep.subr.bf16.mxu0 0
    %2189 = vmatpush1.bf16.msra.mxu0 %v506
    %2190 = vmatprep.mubr.bf16.mxu0 %v2069
    %2191 = vmatmul.mubr.bf16.gmra.mrb[0].mxu0 %v2055
    %v2192 = vpop.f32.mrb[0].mxu0
    %v2193 = vadd.f32 %v2153, %v2192
    %v2194 = vpop.f32.mrb[0].mxu0
    %v2195 = vpop.f32.mrb[0].mxu0
    %v2196 = vpop.f32.mrb[0].mxu0
    %2197 = vdwg.mxu0
    %v2198 = vadd.f32 %v2021, %v2193
    %v2199 = vmul.f32 %v2198, 0.25
    %v2200 = vld [vmem:[%s3] sm:$0x1]
    %v2202 = vlaneseq
    %v2203 = vshrl.u32 %v2202, 7
    %v2204 = vsub.s32 0, %v2203
    %v2205 = vrot.slane %v2200, %v2204
    %v2207 = vadd.f32 %v2199, %v2205
    %vm2208 = vcmask 238592
    %2209 = vst.msk [vmem:[#allocation2] sm:$0x3] %vm2208, %v2207
    // Predicated region
    $region18: #{nlp_head_pallas.1} parent=1 // pred_check
      _
    $region19: #{nlp_head_pallas.1} parent=1 // pred_check_branch
      %2211 = sbr.rel (0) target = $region21
    $region20: #{nlp_head_pallas.1} parent=1 // pred_region
      %s2213 = ssub.s32 32, 32
      %2214 = vsyncadd [#allocation3], %s2213
      %s2216 = sshll.u32 [#allocation2], 4
      %s2217 = int_to_ptr.vmem [resolvable:$true] %s2216
      %2219 = dma.vmem_to_hbm [thread:$0]  %s2217, 32, %s4, [#allocation3]
    $region21: #{nlp_head_pallas.1} parent=1 // pred_fallthru
      _
    // Predicated region
    $region22: #{nlp_head_pallas.1} parent=1 // pred_check
      _
    $region23: #{nlp_head_pallas.1} parent=1 // pred_check_branch
      %2221 = sbr.rel (0) target = $region25
    $region24: #{nlp_head_pallas.1} parent=1 // pred_region
      %2222 = dma.done [#allocation3], 32
    $region25: #{nlp_head_pallas.1} parent=1 // pred_fallthru
      _
    %2223 = vsyncpa [#allocation3], 1

</llo_original>
